<compile_context>
chip_gen: v5e
topology: v5e:2x2
jax: 0.10.0
libtpu: 0.0.40
codegen_flags: <defaults>
</compile_context>

<pallas_src>
import functools

import jax
import jax.numpy as jnp
from jax.experimental import pallas as pl
from jax.experimental.pallas import tpu as pltpu

# ---- synthetic "RAM" configuration (small stand-ins for 384x384 / swin_l) ----
RAM_SIZE = 64                     # stand-in for the 384x384 RAM input size
PATCH = 16
N_PATCH = (RAM_SIZE // PATCH) ** 2          # 16 patches per image
PATCH_DIM = 3 * PATCH * PATCH               # 768
EMBED_DIM = 128                             # stand-in embedding dim
NUM_TAGS = 128                              # stand-in for RAM's 4585 tag logits
EPS = 1e-7

# Row tiling: each grid step processes IMGS_PER_TILE whole images per stream,
# giving ROW_TILE = 128 rows/stream and 3*ROW_TILE = 384 M-rows per matmul.
IMGS_PER_TILE = 8
ROW_TILE = IMGS_PER_TILE * N_PATCH          # 128 rows per stream per block


# ----------------------------- fused Pallas kernel ----------------------------
def _fused_ram_contrast_kernel(x_ref, w1_ref, w2_ref, loss_ref,
                               fap_acc, fan_acc, pooled_acc,
                               *, ns, imgs_per_tile, n_patch, batch,
                               feat_inv_count, logit_inv_count, ablation):
    step = pl.program_id(0)
    row_tile = imgs_per_tile * n_patch          # rows per stream in this block

    @pl.when(step == 0)
    def _init():
        fap_acc[...] = jnp.zeros_like(fap_acc)
        if not ablation:
            fan_acc[...] = jnp.zeros_like(fan_acc)

    # ONE stacked patch-embed matmul: (ns*ROW_TILE, 768) x (768, EMBED), bf16
    # operands on the MXU, f32 accumulation.
    xf = jnp.dot(x_ref[...], w1_ref[...],
                 preferred_element_type=jnp.float32)      # (ns*row_tile, EMBED)

    a_f = xf[0:row_tile]
    p_f = xf[row_tile:2 * row_tile]

    # O(vreg) feature-diff accumulators: fold the sublane dim in groups of 8
    # (pure VPU vreg adds), keep only (8, EMBED) resident across the grid.
    fap_acc[...] += jnp.abs(a_f - p_f).reshape(
        row_tile // 8, 8, EMBED_DIM).sum(axis=0)
    if not ablation:
        n_f = xf[2 * row_tile:3 * row_tile]
        fan_acc[...] += jnp.abs(a_f - n_f).reshape(
            row_tile // 8, 8, EMBED_DIM).sum(axis=0)

    # Per-image pooled feature means (mean over the n_patch rows of each image),
    # kept in f32; tag-head matmul is deferred to the finalize step.
    pooled = xf.reshape(ns * imgs_per_tile, n_patch, EMBED_DIM).sum(axis=1)
    pooled = pooled * (1.0 / n_patch)                     # (ns*imgs, EMBED)
    for s in range(ns):                                   # static unroll over streams
        start = pl.multiple_of(s * batch + step * imgs_per_tile, imgs_per_tile)
        pooled_acc[pl.ds(start, imgs_per_tile), :] = (
            pooled[s * imgs_per_tile:(s + 1) * imgs_per_tile])

    @pl.when(step == pl.num_programs(0) - 1)
    def _finalize():
        # Tag-head logits once, for all streams and all images: M = ns*B.
        # (bf16 cast of the pooled activations; see correctness note in wrapper.)
        logits = jnp.dot(pooled_acc[...].astype(jnp.bfloat16), w2_ref[...],
                         preferred_element_type=jnp.float32)   # (ns*B, NUM_TAGS)
        a_l = logits[0:batch]
        p_l = logits[batch:2 * batch]

        d_ap = jnp.sum(fap_acc[...]) * feat_inv_count
        d_ap_l = jnp.sum(jnp.abs(a_l - p_l)) * logit_inv_count
        if ablation:                      # static Python branch (matches self.ab)
            loss = d_ap + d_ap_l
        else:
            n_l = logits[2 * batch:3 * batch]
            d_an = jnp.sum(fan_acc[...]) * feat_inv_count
            d_an_l = jnp.sum(jnp.abs(a_l - n_l)) * logit_inv_count
            loss = d_ap / (d_an + EPS) + d_ap_l / (d_an_l + EPS)
        loss_ref[0, 0] = loss             # scalar store straight to SMEM


# ------------------------------- glue (JAX) -----------------------------------
def _extract_patches(x_nchw):
    """NCHW image -> (B*N_PATCH, PATCH_DIM) row-major patch matrix."""
    b, c, h, w = x_nchw.shape
    hp, wp = h // PATCH, w // PATCH
    x = x_nchw.reshape(b, c, hp, PATCH, wp, PATCH)
    x = jnp.transpose(x, (0, 2, 4, 1, 3, 5))          # (B, Hp, Wp, C, P, P)
    return x.reshape(b * hp * wp, c * PATCH * PATCH)


def _image_to_patches(img_nchw):
    """F.interpolate(bilinear, align_corners=False) + patchify, cast to bf16."""
    b = img_nchw.shape[0]
    resized = jax.image.resize(img_nchw.astype(jnp.float32),
                               (b, 3, RAM_SIZE, RAM_SIZE), method="bilinear")
    return _extract_patches(resized).astype(jnp.bfloat16)


def ram_contrast_loss(anchor, positive, negative, w1, w2, ablation=False):
    """Forward pass of RAMContrastLoss (both ablation branches). Returns scalar.

    Numerics note: patches / w1 / w2 / pooled activations are bf16 on the MXU
    with f32 accumulation; expect ~1e-2 relative drift vs. an f32 reference
    (the ratio-of-means loss can amplify it when mean|a-n| is small).
    """
    b = anchor.shape[0]
    assert b % IMGS_PER_TILE == 0, "batch must be a multiple of IMGS_PER_TILE"
    rows = b * N_PATCH
    n_blocks = b // IMGS_PER_TILE
    ns = 2 if ablation else 3             # ablation: negative stream fully dropped

    streams = [anchor, positive] if ablation else [anchor, positive, negative]
    patch_mats = [_image_to_patches(s) for s in streams]    # each (rows, 768) bf16

    # Block-major stacked layout: block i holds [a-tile_i ; p-tile_i ; (n-tile_i)]
    # so each grid step feeds ONE (ns*ROW_TILE, 768) matmul.
    stacked = jnp.stack(
        [m.reshape(n_blocks, ROW_TILE, PATCH_DIM) for m in patch_mats], axis=1)
    stacked = stacked.reshape(n_blocks * ns * ROW_TILE, PATCH_DIM)

    w1_b = w1.astype(jnp.bfloat16)
    w2_b = w2.astype(jnp.bfloat16)

    kernel = functools.partial(
        _fused_ram_contrast_kernel,
        ns=ns,
        imgs_per_tile=IMGS_PER_TILE,
        n_patch=N_PATCH,
        batch=b,
        feat_inv_count=1.0 / float(rows * EMBED_DIM),
        logit_inv_count=1.0 / float(b * NUM_TAGS),
        ablation=bool(ablation),
    )

    loss = pl.pallas_call(
        kernel,
        out_shape=jax.ShapeDtypeStruct((1, 1), jnp.float32),
        grid_spec=pltpu.PrefetchScalarGridSpec(
            num_scalar_prefetch=0,
            grid=(n_blocks,),
            in_specs=[
                pl.BlockSpec((ns * ROW_TILE, PATCH_DIM), lambda i: (i, 0)),  # patches
                pl.BlockSpec((PATCH_DIM, EMBED_DIM), lambda i: (0, 0)),      # w1 (inv)
                pl.BlockSpec((EMBED_DIM, NUM_TAGS), lambda i: (0, 0)),       # w2 (inv)
            ],
            out_specs=pl.BlockSpec(memory_space=pltpu.MemorySpace.SMEM),
            scratch_shapes=[
                pltpu.VMEM((8, EMBED_DIM), jnp.float32),      # folded sum |a_f - p_f|
                pltpu.VMEM((8, EMBED_DIM), jnp.float32),      # folded sum |a_f - n_f|
                pltpu.VMEM((ns * b, EMBED_DIM), jnp.float32),  # per-image pooled feats
            ],
        ),
        compiler_params=pltpu.CompilerParams(
            # The grid axis carries the loss accumulators (a reduction), so it
            # stays "arbitrary".  TODO(synk): v7x megacore split -> per-core
            # partial sums reduced outside the kernel.
            dimension_semantics=("arbitrary",),
            vmem_limit_bytes=32 * 1024 * 1024,
        ),
    )(stacked, w1_b, w2_b)
    return loss[0, 0]


# --------------------------------- main ---------------------------------------
if __name__ == "__main__":
    # Deterministic inputs / synthetic backbone weights, all from PRNGKey(0).
    kw1, kw2, k_a, k_p, k_n = jax.random.split(jax.random.PRNGKey(0), 5)
    w1 = (jax.random.normal(kw1, (PATCH_DIM, EMBED_DIM), jnp.float32)
          / jnp.sqrt(PATCH_DIM))
    w2 = (jax.random.normal(kw2, (EMBED_DIM, NUM_TAGS), jnp.float32)
          / jnp.sqrt(EMBED_DIM))

    # Small NCHW inputs; batch=16 so ROW_TILE=128 rows/stream and 2 grid steps.
    anchor = jax.random.uniform(k_a, (16, 3, 32, 32), jnp.float32)
    positive = jax.random.uniform(k_p, (16, 3, 32, 32), jnp.float32)
    negative = jax.random.uniform(k_n, (16, 3, 32, 32), jnp.float32)

    loss = jax.jit(ram_contrast_loss, static_argnums=(5,))(
        anchor, positive, negative, w1, w2, False)
    jax.block_until_ready(loss)
    print("KERNEL_OK")
</pallas_src>

<mosaic_0001>
module attributes {stable_mosaic.version = 11 : i64} {
  func.func @_fused_ram_contrast_kernel(%arg0: i32, %arg1: memref<384x768xbf16, #tpu.memory_space<vmem>>, %arg2: memref<768x128xbf16, #tpu.memory_space<vmem>>, %arg3: memref<128x128xbf16, #tpu.memory_space<vmem>>, %arg4: memref<1x1xf32, #tpu.memory_space<smem>>, %arg5: memref<8x128xf32, #tpu.memory_space<vmem>>, %arg6: memref<8x128xf32, #tpu.memory_space<vmem>>, %arg7: memref<48x128xf32, #tpu.memory_space<vmem>>) attributes {dimension_semantics = [#tpu.dimension_semantics<arbitrary>], iteration_bounds = array<i64: 2>, scalar_prefetch = 0 : i64, scratch_operands = 3 : i64, tpu.core_type = #tpu.core_type<tc>, window_params = [{transform_indices = @transform_0, window_bounds = array<i64: 384, 768>}, {pipeline_mode = #tpu.pipeline_mode<synchronous>, transform_indices = @transform_1, window_bounds = array<i64: 768, 128>}, {pipeline_mode = #tpu.pipeline_mode<synchronous>, transform_indices = @transform_2, window_bounds = array<i64: 128, 128>}, {transform_indices = @transform_3, window_bounds = array<i64: 1, 1>}]} {
    %c0_i32 = arith.constant 0 : i32
    %0 = arith.cmpi eq, %arg0, %c0_i32 : i32
    %1 = arith.extui %0 : i1 to i32
    %c0_i32_0 = arith.constant 0 : i32
    %2 = arith.cmpi ne, %1, %c0_i32_0 : i32
    scf.if %2 {
      %cst_23 = arith.constant 0.000000e+00 : f32
      %48 = vector.broadcast %cst_23 : f32 to vector<8x128xf32>
      %c0_24 = arith.constant 0 : index
      %c0_25 = arith.constant 0 : index
      %49 = vector.load %arg5[%c0_24, %c0_25] : memref<8x128xf32, #tpu.memory_space<vmem>>, vector<8x128xf32>
      tpu.vector_store %arg5[%c0_24, %c0_25], %48 {strides = array<i32>} : memref<8x128xf32, #tpu.memory_space<vmem>>, vector<8x128xf32>,
      %cst_26 = arith.constant 0.000000e+00 : f32
      %50 = vector.broadcast %cst_26 : f32 to vector<8x128xf32>
      %c0_27 = arith.constant 0 : index
      %c0_28 = arith.constant 0 : index
      %51 = vector.load %arg6[%c0_27, %c0_28] : memref<8x128xf32, #tpu.memory_space<vmem>>, vector<8x128xf32>
      tpu.vector_store %arg6[%c0_27, %c0_28], %50 {strides = array<i32>} : memref<8x128xf32, #tpu.memory_space<vmem>>, vector<8x128xf32>,
    } else {
    }
    %c0 = arith.constant 0 : index
    %c0_1 = arith.constant 0 : index
    %3 = vector.load %arg1[%c0, %c0_1] : memref<384x768xbf16, #tpu.memory_space<vmem>>, vector<384x768xbf16>
    %c0_2 = arith.constant 0 : index
    %c0_3 = arith.constant 0 : index
    %4 = vector.load %arg2[%c0_2, %c0_3] : memref<768x128xbf16, #tpu.memory_space<vmem>>, vector<768x128xbf16>
    %cst = arith.constant dense<0.000000e+00> : vector<384x128xf32>
    %5 = tpu.matmul %3, %4, %cst {dimension_numbers = #tpu.dot_dimension_numbers<[1], [0], [0], [1], [0, 0, 1, 1], [], []>} : vector<384x768xbf16>, vector<768x128xbf16>, vector<384x128xf32> -> vector<384x128xf32>
    %6 = vector.extract_strided_slice %5 {offsets = [0, 0], sizes = [128, 128], strides = [1, 1]} : vector<384x128xf32> to vector<128x128xf32>
    %7 = vector.extract_strided_slice %5 {offsets = [128, 0], sizes = [128, 128], strides = [1, 1]} : vector<384x128xf32> to vector<128x128xf32>
    %c0_4 = arith.constant 0 : index
    %c0_5 = arith.constant 0 : index
    %8 = vector.load %arg5[%c0_4, %c0_5] : memref<8x128xf32, #tpu.memory_space<vmem>>, vector<8x128xf32>
    %9 = arith.subf %6, %7 : vector<128x128xf32>
    %10 = math.absf %9 : vector<128x128xf32>
    %11 = vector.shape_cast %10 : vector<128x128xf32> to vector<16x8x128xf32>
    %cst_6 = arith.constant dense<0.000000e+00> : vector<8x128xf32>
    %12 = vector.multi_reduction <add>, %11, %cst_6 [0] : vector<16x8x128xf32> to vector<8x128xf32>
    %13 = arith.addf %8, %12 : vector<8x128xf32>
    %c0_7 = arith.constant 0 : index
    %c0_8 = arith.constant 0 : index
    %14 = vector.load %arg5[%c0_7, %c0_8] : memref<8x128xf32, #tpu.memory_space<vmem>>, vector<8x128xf32>
    tpu.vector_store %arg5[%c0_7, %c0_8], %13 {strides = array<i32>} : memref<8x128xf32, #tpu.memory_space<vmem>>, vector<8x128xf32>,
    %15 = vector.extract_strided_slice %5 {offsets = [256, 0], sizes = [128, 128], strides = [1, 1]} : vector<384x128xf32> to vector<128x128xf32>
    %c0_9 = arith.constant 0 : index
    %c0_10 = arith.constant 0 : index
    %16 = vector.load %arg6[%c0_9, %c0_10] : memref<8x128xf32, #tpu.memory_space<vmem>>, vector<8x128xf32>
    %17 = arith.subf %6, %15 : vector<128x128xf32>
    %18 = math.absf %17 : vector<128x128xf32>
    %19 = vector.shape_cast %18 : vector<128x128xf32> to vector<16x8x128xf32>
    %cst_11 = arith.constant dense<0.000000e+00> : vector<8x128xf32>
    %20 = vector.multi_reduction <add>, %19, %cst_11 [0] : vector<16x8x128xf32> to vector<8x128xf32>
    %21 = arith.addf %16, %20 : vector<8x128xf32>
    %c0_12 = arith.constant 0 : index
    %c0_13 = arith.constant 0 : index
    %22 = vector.load %arg6[%c0_12, %c0_13] : memref<8x128xf32, #tpu.memory_space<vmem>>, vector<8x128xf32>
    tpu.vector_store %arg6[%c0_12, %c0_13], %21 {strides = array<i32>} : memref<8x128xf32, #tpu.memory_space<vmem>>, vector<8x128xf32>,
    %23 = vector.shape_cast %5 : vector<384x128xf32> to vector<24x16x128xf32>
    %cst_14 = arith.constant dense<0.000000e+00> : vector<24x128xf32>
    %24 = vector.multi_reduction <add>, %23, %cst_14 [1] : vector<24x16x128xf32> to vector<24x128xf32>
    %cst_15 = arith.constant 6.250000e-02 : f32
    %25 = vector.broadcast %cst_15 : f32 to vector<24x128xf32>
    %26 = arith.mulf %24, %25 : vector<24x128xf32>
    %c8_i32 = arith.constant 8 : i32
    %27 = arith.muli %arg0, %c8_i32 : i32
    %c0_i32_16 = arith.constant 0 : i32
    %28 = arith.addi %c0_i32_16, %27 : i32
    %29 = tpu.assume_multiple %28, 8 : i32
    %30 = vector.extract_strided_slice %26 {offsets = [0, 0], sizes = [8, 128], strides = [1, 1]} : vector<24x128xf32> to vector<8x128xf32>
    %31 = arith.index_cast %29 : i32 to index
    %c0_17 = arith.constant 0 : index
    %32 = vector.load %arg7[%31, %c0_17] : memref<48x128xf32, #tpu.memory_space<vmem>>, vector<8x128xf32>
    tpu.vector_store %arg7[%31, %c0_17], %30 {strides = array<i32>} : memref<48x128xf32, #tpu.memory_space<vmem>>, vector<8x128xf32>,
    %c8_i32_18 = arith.constant 8 : i32
    %33 = arith.muli %arg0, %c8_i32_18 : i32
    %c16_i32 = arith.constant 16 : i32
    %34 = arith.addi %c16_i32, %33 : i32
    %35 = tpu.assume_multiple %34, 8 : i32
    %36 = vector.extract_strided_slice %26 {offsets = [8, 0], sizes = [8, 128], strides = [1, 1]} : vector<24x128xf32> to vector<8x128xf32>
    %37 = arith.index_cast %35 : i32 to index
    %c0_19 = arith.constant 0 : index
    %38 = vector.load %arg7[%37, %c0_19] : memref<48x128xf32, #tpu.memory_space<vmem>>, vector<8x128xf32>
    tpu.vector_store %arg7[%37, %c0_19], %36 {strides = array<i32>} : memref<48x128xf32, #tpu.memory_space<vmem>>, vector<8x128xf32>,
    %c8_i32_20 = arith.constant 8 : i32
    %39 = arith.muli %arg0, %c8_i32_20 : i32
    %c32_i32 = arith.constant 32 : i32
    %40 = arith.addi %c32_i32, %39 : i32
    %41 = tpu.assume_multiple %40, 8 : i32
    %42 = vector.extract_strided_slice %26 {offsets = [16, 0], sizes = [8, 128], strides = [1, 1]} : vector<24x128xf32> to vector<8x128xf32>
    %43 = arith.index_cast %41 : i32 to index
    %c0_21 = arith.constant 0 : index
    %44 = vector.load %arg7[%43, %c0_21] : memref<48x128xf32, #tpu.memory_space<vmem>>, vector<8x128xf32>
    tpu.vector_store %arg7[%43, %c0_21], %42 {strides = array<i32>} : memref<48x128xf32, #tpu.memory_space<vmem>>, vector<8x128xf32>,
    %c1_i32 = arith.constant 1 : i32
    %45 = arith.cmpi eq, %arg0, %c1_i32 : i32
    %46 = arith.extui %45 : i1 to i32
    %c0_i32_22 = arith.constant 0 : i32
    %47 = arith.cmpi ne, %46, %c0_i32_22 : i32
    scf.if %47 {
      %c0_23 = arith.constant 0 : index
      %c0_24 = arith.constant 0 : index
      %48 = vector.load %arg7[%c0_23, %c0_24] : memref<48x128xf32, #tpu.memory_space<vmem>>, vector<48x128xf32>
      %49 = arith.truncf %48 : vector<48x128xf32> to vector<48x128xbf16>
      %c0_25 = arith.constant 0 : index
      %c0_26 = arith.constant 0 : index
      %50 = vector.load %arg3[%c0_25, %c0_26] : memref<128x128xbf16, #tpu.memory_space<vmem>>, vector<128x128xbf16>
      %cst_27 = arith.constant dense<0.000000e+00> : vector<48x128xf32>
      %51 = tpu.matmul %49, %50, %cst_27 {dimension_numbers = #tpu.dot_dimension_numbers<[1], [0], [0], [1], [0, 0, 1, 1], [], []>} : vector<48x128xbf16>, vector<128x128xbf16>, vector<48x128xf32> -> vector<48x128xf32>
      %52 = vector.extract_strided_slice %51 {offsets = [0, 0], sizes = [16, 128], strides = [1, 1]} : vector<48x128xf32> to vector<16x128xf32>
      %53 = vector.extract_strided_slice %51 {offsets = [16, 0], sizes = [16, 128], strides = [1, 1]} : vector<48x128xf32> to vector<16x128xf32>
      %c0_28 = arith.constant 0 : index
      %c0_29 = arith.constant 0 : index
      %54 = vector.load %arg5[%c0_28, %c0_29] : memref<8x128xf32, #tpu.memory_space<vmem>>, vector<8x128xf32>
      %55 = vector.shape_cast %54 : vector<8x128xf32> to vector<1x8x128xf32>
      %cst_30 = arith.constant dense<0.000000e+00> : vector<1xf32>
      %56 = vector.multi_reduction <add>, %55, %cst_30 [1, 2] : vector<1x8x128xf32> to vector<1xf32>
      %57 = vector.shape_cast %56 : vector<1xf32> to vector<1x1x1xf32>
      %58 = vector.extract %57[0, 0, 0] : f32 from vector<1x1x1xf32>
      %cst_31 = arith.constant 3.05175781E-5 : f32
      %59 = arith.mulf %58, %cst_31 : f32
      %60 = arith.subf %52, %53 : vector<16x128xf32>
      %61 = math.absf %60 : vector<16x128xf32>
      %62 = vector.shape_cast %61 : vector<16x128xf32> to vector<1x16x128xf32>
      %cst_32 = arith.constant dense<0.000000e+00> : vector<1xf32>
      %63 = vector.multi_reduction <add>, %62, %cst_32 [1, 2] : vector<1x16x128xf32> to vector<1xf32>
      %64 = vector.shape_cast %63 : vector<1xf32> to vector<1x1x1xf32>
      %65 = vector.extract %64[0, 0, 0] : f32 from vector<1x1x1xf32>
      %cst_33 = arith.constant 4.8828125E-4 : f32
      %66 = arith.mulf %65, %cst_33 : f32
      %67 = vector.extract_strided_slice %51 {offsets = [32, 0], sizes = [16, 128], strides = [1, 1]} : vector<48x128xf32> to vector<16x128xf32>
      %c0_34 = arith.constant 0 : index
      %c0_35 = arith.constant 0 : index
      %68 = vector.load %arg6[%c0_34, %c0_35] : memref<8x128xf32, #tpu.memory_space<vmem>>, vector<8x128xf32>
      %69 = vector.shape_cast %68 : vector<8x128xf32> to vector<1x8x128xf32>
      %cst_36 = arith.constant dense<0.000000e+00> : vector<1xf32>
      %70 = vector.multi_reduction <add>, %69, %cst_36 [1, 2] : vector<1x8x128xf32> to vector<1xf32>
      %71 = vector.shape_cast %70 : vector<1xf32> to vector<1x1x1xf32>
      %72 = vector.extract %71[0, 0, 0] : f32 from vector<1x1x1xf32>
      %cst_37 = arith.constant 3.05175781E-5 : f32
      %73 = arith.mulf %72, %cst_37 : f32
      %74 = arith.subf %52, %67 : vector<16x128xf32>
      %75 = math.absf %74 : vector<16x128xf32>
      %76 = vector.shape_cast %75 : vector<16x128xf32> to vector<1x16x128xf32>
      %cst_38 = arith.constant dense<0.000000e+00> : vector<1xf32>
      %77 = vector.multi_reduction <add>, %76, %cst_38 [1, 2] : vector<1x16x128xf32> to vector<1xf32>
      %78 = vector.shape_cast %77 : vector<1xf32> to vector<1x1x1xf32>
      %79 = vector.extract %78[0, 0, 0] : f32 from vector<1x1x1xf32>
      %cst_39 = arith.constant 4.8828125E-4 : f32
      %80 = arith.mulf %79, %cst_39 : f32
      %cst_40 = arith.constant 1.000000e-07 : f32
      %81 = arith.addf %73, %cst_40 : f32
      %82 = arith.divf %59, %81 : f32
      %cst_41 = arith.constant 1.000000e-07 : f32
      %83 = arith.addf %80, %cst_41 : f32
      %84 = arith.divf %66, %83 : f32
      %85 = arith.addf %82, %84 : f32
      %c0_42 = arith.constant 0 : index
      %c0_43 = arith.constant 0 : index
      %86 = memref.load %arg4[%c0_42, %c0_43] : memref<1x1xf32, #tpu.memory_space<smem>>
      memref.store %85, %arg4[%c0_42, %c0_43] : memref<1x1xf32, #tpu.memory_space<smem>>
    } else {
    }
    return
  }
  func.func @transform_0(%arg0: i32) -> (i32, i32) {
    %c0_i32 = arith.constant 0 : i32
    %c0_i32_0 = arith.constant 0 : i32
    return %arg0, %c0_i32 : i32, i32
  }
  func.func @transform_1(%arg0: i32) -> (i32, i32) {
    %c0_i32 = arith.constant 0 : i32
    %c0_i32_0 = arith.constant 0 : i32
    %c0_i32_1 = arith.constant 0 : i32
    return %c0_i32, %c0_i32_0 : i32, i32
  }
  func.func @transform_2(%arg0: i32) -> (i32, i32) {
    %c0_i32 = arith.constant 0 : i32
    %c0_i32_0 = arith.constant 0 : i32
    %c0_i32_1 = arith.constant 0 : i32
    return %c0_i32, %c0_i32_0 : i32, i32
  }
  func.func @transform_3(%arg0: i32) -> (i32, i32) {
    %c0_i32 = arith.constant 0 : i32
    %c0_i32_0 = arith.constant 0 : i32
    %c0_i32_1 = arith.constant 0 : i32
    return %c0_i32, %c0_i32_0 : i32, i32
  }
}

</mosaic_0001>

<llo_original>
// kernel: ram_contrast_loss.1
$region0: #{ram_contrast_loss.1}
  #allocation0 [shape = 'u32[]', space=smem, size = 0x4, offset = 0x4, fixed_abs, tag = 'smem constant byte address 0x4 - core index']
  #allocation1 [shape = 'u32[72,128]{1,0:T(1,128)}', space=vmem, size = 0x9000, scoped, tag = 'internal scratch']
  #allocation2 [shape = 'f32[8,128]{1,0:T(8,128)}', space=vmem, size = 0x1000, scoped, tag = 'scratch operand']
  #allocation3 [shape = 'f32[8,128]{1,0:T(8,128)}', space=vmem, size = 0x1000, scoped, tag = 'scratch operand']
  #allocation4 [shape = 'f32[48,128]{1,0:T(8,128)}', space=vmem, size = 0x6000, scoped, tag = 'scratch operand']
  %s0 = inlined_call_operand.vmem [shape: bf16[768,768], index: 0, kind: input, shape index: {}]
  %s1 = inlined_call_operand.vmem [shape: bf16[768,128], index: 1, kind: input, shape index: {}]
  %s2 = inlined_call_operand.vmem [shape: bf16[128,128], index: 2, kind: input, shape index: {}]
  %s3 = inlined_call_operand.hbm [shape: f32[1,1], index: 3, kind: output, shape index: {}]
  %s4 = sld [smem:[#allocation0]]
  $region53: #{ram_contrast_loss.1} parent=0
    _
  %s6 = ssub.s32 1, %s4
  %s7 = scalar_select 0, %s6, %s4
  $region1: #{ram_contrast_loss.1} parent=0
    #allocation5 [shape = 'u8[512]{0}', space=smem, size = 0x200, scoped, tag = 'output window, operand 0, single buffered']
    #allocation6 [shape = 's32[2]{0}', space=sflag, size = 0x8, scoped, tag = 'scoped memory for ram_contrast_loss.1']
    %8 = vsyncpa [#allocation6], 0
    loop: start=0, step=1, limit=4
    $region2: #{ram_contrast_loss.1} parent=1 // loop_pre_header
      _
    $region3: #{ram_contrast_loss.1} parent=1 // loop_header
      %s10 = sphi 0, %s14
      %p11 = scmp.ge.s32.totalorder %s10, 4
      %s20 = sphi 0, %s22
      %s23 = sphi 0, %s20
      %s24 = sphi 0, %s23
      %s40 = sphi 0, %s24
      %s44 = sphi 0, %s44
      %s46 = sphi 0, %s44
      %s47 = sphi 0, %s46
      %s61 = sphi 0, %s47
      %s65 = sphi 0, %s65
      %s67 = sphi 0, %s65
      %s68 = sphi 0, %s67
      %s82 = sphi 0, %s68
      %s86 = sphi 0, %s86
      %s88 = sphi 0, %s86
      %s89 = sphi 0, %s88
      %s103 = sphi 0, %s89
    $region4: #{ram_contrast_loss.1} parent=1 // loop_header_branch
      %13 = sbr.rel (%p11) target = $region8
    $region5: #{ram_contrast_loss.1} parent=1 // loop_body
      %s15 = ssub.s32 %s10, 1
      %s16 = ssub.s32 %s10, 2
      %s17 = sadd.s32 %s10, 1
      %s18 = ssub.s32 %s10, %s17
      %p19 = scmp.eq.s32.totalorder %s18, 0
      %s21 = sadd.s32 %s20, 1
      %s22 = scalar_select %p19, %s20, %s21
      %p25 = pneg %p19
      %p26 = scmp.eq.s32.totalorder %s10, 1
      %p27 = por %p25, %p26
      %p28 = scmp.ne.s32.totalorder %s20, %s23
      %p29 = scmp.eq.s32.totalorder %s10, 0
      %p30 = por %p28, %p29
      %p31 = scmp.ne.s32.totalorder %s20, %s23
      %p32 = scmp.eq.s32.totalorder %s15, 1
      %p33 = por %p31, %p32
      %p34 = scmp.ne.s32.totalorder %s23, %s24
      %p35 = scmp.eq.s32.totalorder %s15, 0
      %p36 = por %p34, %p35
      %p37 = scmp.ne.s32.totalorder %s23, %s24
      %p38 = scmp.eq.s32.totalorder %s16, 1
      %p39 = por %p37, %p38
      %p41 = scmp.ne.s32.totalorder %s24, %s40
      %p42 = scmp.eq.s32.totalorder %s16, 0
      %p43 = por %p41, %p42
      %s45 = sadd.s32 %s44, 1
      %p48 = scmp.eq.s32.totalorder %s10, 1
      %p49 = scmp.ne.s32.totalorder %s44, %s46
      %p50 = scmp.eq.s32.totalorder %s10, 0
      %p51 = por %p49, %p50
      %p52 = scmp.ne.s32.totalorder %s44, %s46
      %p53 = scmp.eq.s32.totalorder %s15, 1
      %p54 = por %p52, %p53
      %p55 = scmp.ne.s32.totalorder %s46, %s47
      %p56 = scmp.eq.s32.totalorder %s15, 0
      %p57 = por %p55, %p56
      %p58 = scmp.ne.s32.totalorder %s46, %s47
      %p59 = scmp.eq.s32.totalorder %s16, 1
      %p60 = por %p58, %p59
      %p62 = scmp.ne.s32.totalorder %s47, %s61
      %p63 = scmp.eq.s32.totalorder %s16, 0
      %p64 = por %p62, %p63
      %s66 = sadd.s32 %s65, 1
      %p69 = scmp.eq.s32.totalorder %s10, 1
      %p70 = scmp.ne.s32.totalorder %s65, %s67
      %p71 = scmp.eq.s32.totalorder %s10, 0
      %p72 = por %p70, %p71
      %p73 = scmp.ne.s32.totalorder %s65, %s67
      %p74 = scmp.eq.s32.totalorder %s15, 1
      %p75 = por %p73, %p74
      %p76 = scmp.ne.s32.totalorder %s67, %s68
      %p77 = scmp.eq.s32.totalorder %s15, 0
      %p78 = por %p76, %p77
      %p79 = scmp.ne.s32.totalorder %s67, %s68
      %p80 = scmp.eq.s32.totalorder %s16, 1
      %p81 = por %p79, %p80
      %p83 = scmp.ne.s32.totalorder %s68, %s82
      %p84 = scmp.eq.s32.totalorder %s16, 0
      %p85 = por %p83, %p84
      %s87 = sadd.s32 %s86, 1
      %p90 = scmp.eq.s32.totalorder %s10, 1
      %p91 = scmp.ne.s32.totalorder %s86, %s88
      %p92 = scmp.eq.s32.totalorder %s10, 0
      %p93 = por %p91, %p92
      %p94 = scmp.ne.s32.totalorder %s86, %s88
      %p95 = scmp.eq.s32.totalorder %s15, 1
      %p96 = por %p94, %p95
      %p97 = scmp.ne.s32.totalorder %s88, %s89
      %p98 = scmp.eq.s32.totalorder %s15, 0
      %p99 = por %p97, %p98
      %p100 = scmp.ne.s32.totalorder %s88, %s89
      %p101 = scmp.eq.s32.totalorder %s16, 1
      %p102 = por %p100, %p101
      %p104 = scmp.ne.s32.totalorder %s89, %s103
      %p105 = scmp.eq.s32.totalorder %s16, 0
      %p106 = por %p104, %p105
      %p107 = scmp.le.s32.totalorder 1, %s10
      %p108 = scmp.lt.s32.totalorder %s10, 3
      %p109 = pnand %p107, %p108
      %p110 = pneg %p109
      // Predicated region
      $region9: #{ram_contrast_loss.1} parent=5 // pred_check
        _
      $region10: #{ram_contrast_loss.1} parent=5 // pred_check_branch
        %112 = sbr.rel (%p109) target = $region12
      $region11: #{ram_contrast_loss.1} parent=5 // pred_region
        %s113 = ssub.s32 %s10, 1
        // Predicated region
        $region13: #{ram_contrast_loss.1} parent=11 // pred_check
          %p114 = pneg %p57
        $region14: #{ram_contrast_loss.1} parent=11 // pred_check_branch
          %116 = sbr.rel (%p114) target = $region16
        $region15: #{ram_contrast_loss.1} parent=11 // pred_region
          _
        $region16: #{ram_contrast_loss.1} parent=11 // pred_fallthru
          _
        // Predicated region
        $region17: #{ram_contrast_loss.1} parent=11 // pred_check
          %p117 = pneg %p78
        $region18: #{ram_contrast_loss.1} parent=11 // pred_check_branch
          %119 = sbr.rel (%p117) target = $region20
        $region19: #{ram_contrast_loss.1} parent=11 // pred_region
          _
        $region20: #{ram_contrast_loss.1} parent=11 // pred_fallthru
          _
      $region12: #{ram_contrast_loss.1} parent=5 // pred_fallthru
        _
      %p120 = scmp.lt.s32.totalorder %s10, 2
      // Predicated region
      $region21: #{ram_contrast_loss.1} parent=5 // pred_check
        %p121 = pneg %p120
      $region22: #{ram_contrast_loss.1} parent=5 // pred_check_branch
        %123 = sbr.rel (%p121) target = $region24
      $region23: #{ram_contrast_loss.1} parent=5 // pred_region
        // Predicated region
        $region25: #{ram_contrast_loss.1} parent=23 // pred_check
          %p124 = pneg %p30
        $region26: #{ram_contrast_loss.1} parent=23 // pred_check_branch
          %126 = sbr.rel (%p124) target = $region28
        $region27: #{ram_contrast_loss.1} parent=23 // pred_region
          %s127 = smul.u32 48, %s10
          %p128 = scmp.lt.s32.totalorder %s127, 95
          %s129 = scalar_select %p128, %s127, 95
          %s130 = smul.addr %s129, 6
          %s131 = smul.addr %s130, 4
          %s132 = scalar_lea.vmem %s0, %s131
          %s133 = smul.u32 48, %s10
        $region28: #{ram_contrast_loss.1} parent=23 // pred_fallthru
          _
      $region24: #{ram_contrast_loss.1} parent=5 // pred_fallthru
        _
      %p134 = scmp.le.s32.totalorder 1, %s10
      %p135 = scmp.lt.s32.totalorder %s10, 3
      %p136 = pnand %p134, %p135
      %p137 = pneg %p136
      // Predicated region
      $region29: #{ram_contrast_loss.1} parent=5 // pred_check
        _
      $region30: #{ram_contrast_loss.1} parent=5 // pred_check_branch
        %139 = sbr.rel (%p136) target = $region32
      $region31: #{ram_contrast_loss.1} parent=5 // pred_region
        %s140 = ssub.s32 %s10, 1
        %s141 = smul.u32 48, %s15
        %p142 = scmp.lt.s32.totalorder %s141, 95
        %s143 = scalar_select %p142, %s141, 95
        %s144 = smul.addr %s143, 6
        %s145 = smul.addr %s144, 4
        %s146 = scalar_lea.vmem %s0, %s145
        %p147 = pneg %p36
        %p148 = pneg %p33
        %p149 = pneg %p57
        %p150 = pneg %p54
        %p151 = pneg %p78
        %p152 = pneg %p75
        %p153 = pneg %p99
        %p154 = pneg %p96
        %s155 = smul.u32 48, %s15
        %p156 = scmp.lt.s32.totalorder %s155, 95
        %s157 = scalar_select %p156, %s155, 95
        %s158 = smul.addr %s157, 6
        %s159 = smul.addr %s158, 4
        %s160 = scalar_lea.vmem %s0, %s159
        %s161 = smul.u32 48, %s15
        %p162 = scmp.eq.s32.totalorder %s15, 0
        // Predicated region
        $region33: #{ram_contrast_loss.1} parent=31 // pred_check
          %p163 = pneg %p162
        $region34: #{ram_contrast_loss.1} parent=31 // pred_check_branch
          %165 = sbr.rel (%p163) target = $region36
        $region35: #{ram_contrast_loss.1} parent=31 // pred_region
          %166 = vst [vmem:[#allocation2] sm:$0xff] 0.0
          %167 = vst [vmem:[#allocation3] sm:$0xff] 0.0
        $region36: #{ram_contrast_loss.1} parent=31 // pred_fallthru
          _
        %v168 = vld [vmem:[%s160] sm:$0xff]
        %v169 = vld [vmem:[%s160 + $0x8] sm:$0xff]
        %v170 = vld [vmem:[%s160 + $0x10] sm:$0xff]
        %v171 = vld [vmem:[%s160 + $0x18] sm:$0xff]
        %v172 = vld [vmem:[%s160 + $0x20] sm:$0xff]
        %v173 = vld [vmem:[%s160 + $0x28] sm:$0xff]
        %v174 = vld [vmem:[%s160 + $0x30] sm:$0xff]
        %v175 = vld [vmem:[%s160 + $0x38] sm:$0xff]
        %v176 = vld [vmem:[%s160 + $0x40] sm:$0xff]
        %v177 = vld [vmem:[%s160 + $0x48] sm:$0xff]
        %v178 = vld [vmem:[%s160 + $0x50] sm:$0xff]
        %v179 = vld [vmem:[%s160 + $0x58] sm:$0xff]
        %v180 = vld [vmem:[%s160 + $0x60] sm:$0xff]
        %v181 = vld [vmem:[%s160 + $0x68] sm:$0xff]
        %v182 = vld [vmem:[%s160 + $0x70] sm:$0xff]
        %v183 = vld [vmem:[%s160 + $0x78] sm:$0xff]
        %v184 = vld [vmem:[%s160 + $0x80] sm:$0xff]
        %v185 = vld [vmem:[%s160 + $0x88] sm:$0xff]
        %v186 = vld [vmem:[%s160 + $0x90] sm:$0xff]
        %v187 = vld [vmem:[%s160 + $0x98] sm:$0xff]
        %v188 = vld [vmem:[%s160 + $0xa0] sm:$0xff]
        %v189 = vld [vmem:[%s160 + $0xa8] sm:$0xff]
        %v190 = vld [vmem:[%s160 + $0xb0] sm:$0xff]
        %v191 = vld [vmem:[%s160 + $0xb8] sm:$0xff]
        %v192 = vld [vmem:[%s160 + $0xc0] sm:$0xff]
        %v193 = vld [vmem:[%s160 + $0xc8] sm:$0xff]
        %v194 = vld [vmem:[%s160 + $0xd0] sm:$0xff]
        %v195 = vld [vmem:[%s160 + $0xd8] sm:$0xff]
        %v196 = vld [vmem:[%s160 + $0xe0] sm:$0xff]
        %v197 = vld [vmem:[%s160 + $0xe8] sm:$0xff]
        %v198 = vld [vmem:[%s160 + $0xf0] sm:$0xff]
        %v199 = vld [vmem:[%s160 + $0xf8] sm:$0xff]
        %v200 = vld [vmem:[%s160 + $0x100] sm:$0xff]
        %v201 = vld [vmem:[%s160 + $0x108] sm:$0xff]
        %v202 = vld [vmem:[%s160 + $0x110] sm:$0xff]
        %v203 = vld [vmem:[%s160 + $0x118] sm:$0xff]
        %v204 = vld [vmem:[%s160 + $0x120] sm:$0xff]
        %v205 = vld [vmem:[%s160 + $0x128] sm:$0xff]
        %v206 = vld [vmem:[%s160 + $0x130] sm:$0xff]
        %v207 = vld [vmem:[%s160 + $0x138] sm:$0xff]
        %v208 = vld [vmem:[%s160 + $0x140] sm:$0xff]
        %v209 = vld [vmem:[%s160 + $0x148] sm:$0xff]
        %v210 = vld [vmem:[%s160 + $0x150] sm:$0xff]
        %v211 = vld [vmem:[%s160 + $0x158] sm:$0xff]
        %v212 = vld [vmem:[%s160 + $0x160] sm:$0xff]
        %v213 = vld [vmem:[%s160 + $0x168] sm:$0xff]
        %v214 = vld [vmem:[%s160 + $0x170] sm:$0xff]
        %v215 = vld [vmem:[%s160 + $0x178] sm:$0xff]
        %v216 = vld [vmem:[%s160 + $0x180] sm:$0xff]
        %v217 = vld [vmem:[%s160 + $0x188] sm:$0xff]
        %v218 = vld [vmem:[%s160 + $0x190] sm:$0xff]
        %v219 = vld [vmem:[%s160 + $0x198] sm:$0xff]
        %v220 = vld [vmem:[%s160 + $0x1a0] sm:$0xff]
        %v221 = vld [vmem:[%s160 + $0x1a8] sm:$0xff]
        %v222 = vld [vmem:[%s160 + $0x1b0] sm:$0xff]
        %v223 = vld [vmem:[%s160 + $0x1b8] sm:$0xff]
        %v224 = vld [vmem:[%s160 + $0x1c0] sm:$0xff]
        %v225 = vld [vmem:[%s160 + $0x1c8] sm:$0xff]
        %v226 = vld [vmem:[%s160 + $0x1d0] sm:$0xff]
        %v227 = vld [vmem:[%s160 + $0x1d8] sm:$0xff]
        %v228 = vld [vmem:[%s160 + $0x1e0] sm:$0xff]
        %v229 = vld [vmem:[%s160 + $0x1e8] sm:$0xff]
        %v230 = vld [vmem:[%s160 + $0x1f0] sm:$0xff]
        %v231 = vld [vmem:[%s160 + $0x1f8] sm:$0xff]
        %v232 = vld [vmem:[%s160 + $0x200] sm:$0xff]
        %v233 = vld [vmem:[%s160 + $0x208] sm:$0xff]
        %v234 = vld [vmem:[%s160 + $0x210] sm:$0xff]
        %v235 = vld [vmem:[%s160 + $0x218] sm:$0xff]
        %v236 = vld [vmem:[%s160 + $0x220] sm:$0xff]
        %v237 = vld [vmem:[%s160 + $0x228] sm:$0xff]
        %v238 = vld [vmem:[%s160 + $0x230] sm:$0xff]
        %v239 = vld [vmem:[%s160 + $0x238] sm:$0xff]
        %v240 = vld [vmem:[%s160 + $0x240] sm:$0xff]
        %v241 = vld [vmem:[%s160 + $0x248] sm:$0xff]
        %v242 = vld [vmem:[%s160 + $0x250] sm:$0xff]
        %v243 = vld [vmem:[%s160 + $0x258] sm:$0xff]
        %v244 = vld [vmem:[%s160 + $0x260] sm:$0xff]
        %v245 = vld [vmem:[%s160 + $0x268] sm:$0xff]
        %v246 = vld [vmem:[%s160 + $0x270] sm:$0xff]
        %v247 = vld [vmem:[%s160 + $0x278] sm:$0xff]
        %v248 = vld [vmem:[%s160 + $0x280] sm:$0xff]
        %v249 = vld [vmem:[%s160 + $0x288] sm:$0xff]
        %v250 = vld [vmem:[%s160 + $0x290] sm:$0xff]
        %v251 = vld [vmem:[%s160 + $0x298] sm:$0xff]
        %v252 = vld [vmem:[%s160 + $0x2a0] sm:$0xff]
        %v253 = vld [vmem:[%s160 + $0x2a8] sm:$0xff]
        %v254 = vld [vmem:[%s160 + $0x2b0] sm:$0xff]
        %v255 = vld [vmem:[%s160 + $0x2b8] sm:$0xff]
        %v256 = vld [vmem:[%s160 + $0x2c0] sm:$0xff]
        %v257 = vld [vmem:[%s160 + $0x2c8] sm:$0xff]
        %v258 = vld [vmem:[%s160 + $0x2d0] sm:$0xff]
        %v259 = vld [vmem:[%s160 + $0x2d8] sm:$0xff]
        %v260 = vld [vmem:[%s160 + $0x2e0] sm:$0xff]
        %v261 = vld [vmem:[%s160 + $0x2e8] sm:$0xff]
        %v262 = vld [vmem:[%s160 + $0x2f0] sm:$0xff]
        %v263 = vld [vmem:[%s160 + $0x2f8] sm:$0xff]
        %v264 = vld [vmem:[%s160 + $0x300] sm:$0xff]
        %v265 = vld [vmem:[%s160 + $0x308] sm:$0xff]
        %v266 = vld [vmem:[%s160 + $0x310] sm:$0xff]
        %v267 = vld [vmem:[%s160 + $0x318] sm:$0xff]
        %v268 = vld [vmem:[%s160 + $0x320] sm:$0xff]
        %v269 = vld [vmem:[%s160 + $0x328] sm:$0xff]
        %v270 = vld [vmem:[%s160 + $0x330] sm:$0xff]
        %v271 = vld [vmem:[%s160 + $0x338] sm:$0xff]
        %v272 = vld [vmem:[%s160 + $0x340] sm:$0xff]
        %v273 = vld [vmem:[%s160 + $0x348] sm:$0xff]
        %v274 = vld [vmem:[%s160 + $0x350] sm:$0xff]
        %v275 = vld [vmem:[%s160 + $0x358] sm:$0xff]
        %v276 = vld [vmem:[%s160 + $0x360] sm:$0xff]
        %v277 = vld [vmem:[%s160 + $0x368] sm:$0xff]
        %v278 = vld [vmem:[%s160 + $0x370] sm:$0xff]
        %v279 = vld [vmem:[%s160 + $0x378] sm:$0xff]
        %v280 = vld [vmem:[%s160 + $0x380] sm:$0xff]
        %v281 = vld [vmem:[%s160 + $0x388] sm:$0xff]
        %v282 = vld [vmem:[%s160 + $0x390] sm:$0xff]
        %v283 = vld [vmem:[%s160 + $0x398] sm:$0xff]
        %v284 = vld [vmem:[%s160 + $0x3a0] sm:$0xff]
        %v285 = vld [vmem:[%s160 + $0x3a8] sm:$0xff]
        %v286 = vld [vmem:[%s160 + $0x3b0] sm:$0xff]
        %v287 = vld [vmem:[%s160 + $0x3b8] sm:$0xff]
        %v288 = vld [vmem:[%s160 + $0x3c0] sm:$0xff]
        %v289 = vld [vmem:[%s160 + $0x3c8] sm:$0xff]
        %v290 = vld [vmem:[%s160 + $0x3d0] sm:$0xff]
        %v291 = vld [vmem:[%s160 + $0x3d8] sm:$0xff]
        %v292 = vld [vmem:[%s160 + $0x3e0] sm:$0xff]
        %v293 = vld [vmem:[%s160 + $0x3e8] sm:$0xff]
        %v294 = vld [vmem:[%s160 + $0x3f0] sm:$0xff]
        %v295 = vld [vmem:[%s160 + $0x3f8] sm:$0xff]
        %v296 = vld [vmem:[%s160 + $0x400] sm:$0xff]
        %v297 = vld [vmem:[%s160 + $0x408] sm:$0xff]
        %v298 = vld [vmem:[%s160 + $0x410] sm:$0xff]
        %v299 = vld [vmem:[%s160 + $0x418] sm:$0xff]
        %v300 = vld [vmem:[%s160 + $0x420] sm:$0xff]
        %v301 = vld [vmem:[%s160 + $0x428] sm:$0xff]
        %v302 = vld [vmem:[%s160 + $0x430] sm:$0xff]
        %v303 = vld [vmem:[%s160 + $0x438] sm:$0xff]
        %v304 = vld [vmem:[%s160 + $0x440] sm:$0xff]
        %v305 = vld [vmem:[%s160 + $0x448] sm:$0xff]
        %v306 = vld [vmem:[%s160 + $0x450] sm:$0xff]
        %v307 = vld [vmem:[%s160 + $0x458] sm:$0xff]
        %v308 = vld [vmem:[%s160 + $0x460] sm:$0xff]
        %v309 = vld [vmem:[%s160 + $0x468] sm:$0xff]
        %v310 = vld [vmem:[%s160 + $0x470] sm:$0xff]
        %v311 = vld [vmem:[%s160 + $0x478] sm:$0xff]
        %v312 = vld [vmem:[%s1] sm:$0xf]
        %v313 = vld [vmem:[%s1 + $0x4] sm:$0xf]
        %v314 = vld [vmem:[%s1 + $0x8] sm:$0xf]
        %v315 = vld [vmem:[%s1 + $0xc] sm:$0xf]
        %v316 = vld [vmem:[%s1 + $0x10] sm:$0xf]
        %v317 = vld [vmem:[%s1 + $0x14] sm:$0xf]
        %v318 = vld [vmem:[%s1 + $0x18] sm:$0xf]
        %v319 = vld [vmem:[%s1 + $0x1c] sm:$0xf]
        %v320 = vld [vmem:[%s1 + $0x20] sm:$0xf]
        %v321 = vld [vmem:[%s1 + $0x24] sm:$0xf]
        %v322 = vld [vmem:[%s1 + $0x28] sm:$0xf]
        %v323 = vld [vmem:[%s1 + $0x2c] sm:$0xf]
        %v324 = vld [vmem:[%s1 + $0x30] sm:$0xf]
        %v325 = vld [vmem:[%s1 + $0x34] sm:$0xf]
        %v326 = vld [vmem:[%s1 + $0x38] sm:$0xf]
        %v327 = vld [vmem:[%s1 + $0x3c] sm:$0xf]
        %v328 = vld [vmem:[%s1 + $0x40] sm:$0xf]
        %v329 = vld [vmem:[%s1 + $0x44] sm:$0xf]
        %v330 = vld [vmem:[%s1 + $0x48] sm:$0xf]
        %v331 = vld [vmem:[%s1 + $0x4c] sm:$0xf]
        %v332 = vld [vmem:[%s1 + $0x50] sm:$0xf]
        %v333 = vld [vmem:[%s1 + $0x54] sm:$0xf]
        %v334 = vld [vmem:[%s1 + $0x58] sm:$0xf]
        %v335 = vld [vmem:[%s1 + $0x5c] sm:$0xf]
        %v336 = vld [vmem:[%s1 + $0x60] sm:$0xf]
        %v337 = vld [vmem:[%s1 + $0x64] sm:$0xf]
        %v338 = vld [vmem:[%s1 + $0x68] sm:$0xf]
        %v339 = vld [vmem:[%s1 + $0x6c] sm:$0xf]
        %v340 = vld [vmem:[%s1 + $0x70] sm:$0xf]
        %v341 = vld [vmem:[%s1 + $0x74] sm:$0xf]
        %v342 = vld [vmem:[%s1 + $0x78] sm:$0xf]
        %v343 = vld [vmem:[%s1 + $0x7c] sm:$0xf]
        %v344 = vld [vmem:[%s1 + $0x80] sm:$0xf]
        %v345 = vld [vmem:[%s1 + $0x84] sm:$0xf]
        %v346 = vld [vmem:[%s1 + $0x88] sm:$0xf]
        %v347 = vld [vmem:[%s1 + $0x8c] sm:$0xf]
        %v348 = vld [vmem:[%s1 + $0x90] sm:$0xf]
        %v349 = vld [vmem:[%s1 + $0x94] sm:$0xf]
        %v350 = vld [vmem:[%s1 + $0x98] sm:$0xf]
        %v351 = vld [vmem:[%s1 + $0x9c] sm:$0xf]
        %v352 = vld [vmem:[%s1 + $0xa0] sm:$0xf]
        %v353 = vld [vmem:[%s1 + $0xa4] sm:$0xf]
        %v354 = vld [vmem:[%s1 + $0xa8] sm:$0xf]
        %v355 = vld [vmem:[%s1 + $0xac] sm:$0xf]
        %v356 = vld [vmem:[%s1 + $0xb0] sm:$0xf]
        %v357 = vld [vmem:[%s1 + $0xb4] sm:$0xf]
        %v358 = vld [vmem:[%s1 + $0xb8] sm:$0xf]
        %v359 = vld [vmem:[%s1 + $0xbc] sm:$0xf]
        %v360 = vld [vmem:[%s1 + $0xc0] sm:$0xf]
        %v361 = vld [vmem:[%s1 + $0xc4] sm:$0xf]
        %v362 = vld [vmem:[%s1 + $0xc8] sm:$0xf]
        %v363 = vld [vmem:[%s1 + $0xcc] sm:$0xf]
        %v364 = vld [vmem:[%s1 + $0xd0] sm:$0xf]
        %v365 = vld [vmem:[%s1 + $0xd4] sm:$0xf]
        %v366 = vld [vmem:[%s1 + $0xd8] sm:$0xf]
        %v367 = vld [vmem:[%s1 + $0xdc] sm:$0xf]
        %v368 = vld [vmem:[%s1 + $0xe0] sm:$0xf]
        %v369 = vld [vmem:[%s1 + $0xe4] sm:$0xf]
        %v370 = vld [vmem:[%s1 + $0xe8] sm:$0xf]
        %v371 = vld [vmem:[%s1 + $0xec] sm:$0xf]
        %v372 = vld [vmem:[%s1 + $0xf0] sm:$0xf]
        %v373 = vld [vmem:[%s1 + $0xf4] sm:$0xf]
        %v374 = vld [vmem:[%s1 + $0xf8] sm:$0xf]
        %v375 = vld [vmem:[%s1 + $0xfc] sm:$0xf]
        %v376 = vld [vmem:[%s1 + $0x100] sm:$0xf]
        %v377 = vld [vmem:[%s1 + $0x104] sm:$0xf]
        %v378 = vld [vmem:[%s1 + $0x108] sm:$0xf]
        %v379 = vld [vmem:[%s1 + $0x10c] sm:$0xf]
        %v380 = vld [vmem:[%s1 + $0x110] sm:$0xf]
        %v381 = vld [vmem:[%s1 + $0x114] sm:$0xf]
        %v382 = vld [vmem:[%s1 + $0x118] sm:$0xf]
        %v383 = vld [vmem:[%s1 + $0x11c] sm:$0xf]
        %v384 = vld [vmem:[%s1 + $0x120] sm:$0xf]
        %v385 = vld [vmem:[%s1 + $0x124] sm:$0xf]
        %v386 = vld [vmem:[%s1 + $0x128] sm:$0xf]
        %v387 = vld [vmem:[%s1 + $0x12c] sm:$0xf]
        %v388 = vld [vmem:[%s1 + $0x130] sm:$0xf]
        %v389 = vld [vmem:[%s1 + $0x134] sm:$0xf]
        %v390 = vld [vmem:[%s1 + $0x138] sm:$0xf]
        %v391 = vld [vmem:[%s1 + $0x13c] sm:$0xf]
        %v392 = vld [vmem:[%s1 + $0x140] sm:$0xf]
        %v393 = vld [vmem:[%s1 + $0x144] sm:$0xf]
        %v394 = vld [vmem:[%s1 + $0x148] sm:$0xf]
        %v395 = vld [vmem:[%s1 + $0x14c] sm:$0xf]
        %v396 = vld [vmem:[%s1 + $0x150] sm:$0xf]
        %v397 = vld [vmem:[%s1 + $0x154] sm:$0xf]
        %v398 = vld [vmem:[%s1 + $0x158] sm:$0xf]
        %v399 = vld [vmem:[%s1 + $0x15c] sm:$0xf]
        %v400 = vld [vmem:[%s1 + $0x160] sm:$0xf]
        %v401 = vld [vmem:[%s1 + $0x164] sm:$0xf]
        %v402 = vld [vmem:[%s1 + $0x168] sm:$0xf]
        %v403 = vld [vmem:[%s1 + $0x16c] sm:$0xf]
        %v404 = vld [vmem:[%s1 + $0x170] sm:$0xf]
        %v405 = vld [vmem:[%s1 + $0x174] sm:$0xf]
        %v406 = vld [vmem:[%s1 + $0x178] sm:$0xf]
        %v407 = vld [vmem:[%s1 + $0x17c] sm:$0xf]
        %v552 = vunpack.c.l.b16 %v168
        %v553 = vunpack.c.h.b16 %v168
        %v554 = vunpack.c.l.b16 %v169
        %v555 = vunpack.c.h.b16 %v169
        %v556 = vunpack.c.l.b16 %v170
        %v557 = vunpack.c.h.b16 %v170
        %v558 = vunpack.c.l.b16 %v171
        %v559 = vunpack.c.h.b16 %v171
        %v560 = vunpack.c.l.b16 %v172
        %v561 = vunpack.c.h.b16 %v172
        %v562 = vunpack.c.l.b16 %v173
        %v563 = vunpack.c.h.b16 %v173
        %v564 = vunpack.c.l.b16 %v174
        %v565 = vunpack.c.h.b16 %v174
        %v566 = vunpack.c.l.b16 %v175
        %v567 = vunpack.c.h.b16 %v175
        %v568 = vunpack.c.l.b16 %v176
        %v569 = vunpack.c.h.b16 %v176
        %v570 = vunpack.c.l.b16 %v177
        %v571 = vunpack.c.h.b16 %v177
        %v572 = vunpack.c.l.b16 %v178
        %v573 = vunpack.c.h.b16 %v178
        %v574 = vunpack.c.l.b16 %v179
        %v575 = vunpack.c.h.b16 %v179
        %v576 = vunpack.c.l.b16 %v180
        %v577 = vunpack.c.h.b16 %v180
        %v578 = vunpack.c.l.b16 %v181
        %v579 = vunpack.c.h.b16 %v181
        %v580 = vunpack.c.l.b16 %v182
        %v581 = vunpack.c.h.b16 %v182
        %v582 = vunpack.c.l.b16 %v183
        %v583 = vunpack.c.h.b16 %v183
        %v584 = vunpack.c.l.b16 %v184
        %v585 = vunpack.c.h.b16 %v184
        %v586 = vunpack.c.l.b16 %v185
        %v587 = vunpack.c.h.b16 %v185
        %v588 = vunpack.c.l.b16 %v186
        %v589 = vunpack.c.h.b16 %v186
        %v590 = vunpack.c.l.b16 %v187
        %v591 = vunpack.c.h.b16 %v187
        %v592 = vunpack.c.l.b16 %v188
        %v593 = vunpack.c.h.b16 %v188
        %v594 = vunpack.c.l.b16 %v189
        %v595 = vunpack.c.h.b16 %v189
        %v596 = vunpack.c.l.b16 %v190
        %v597 = vunpack.c.h.b16 %v190
        %v598 = vunpack.c.l.b16 %v191
        %v599 = vunpack.c.h.b16 %v191
        %v600 = vunpack.c.l.b16 %v192
        %v601 = vunpack.c.h.b16 %v192
        %v602 = vunpack.c.l.b16 %v193
        %v603 = vunpack.c.h.b16 %v193
        %v604 = vunpack.c.l.b16 %v194
        %v605 = vunpack.c.h.b16 %v194
        %v606 = vunpack.c.l.b16 %v195
        %v607 = vunpack.c.h.b16 %v195
        %v608 = vunpack.c.l.b16 %v196
        %v609 = vunpack.c.h.b16 %v196
        %v610 = vunpack.c.l.b16 %v197
        %v611 = vunpack.c.h.b16 %v197
        %v612 = vunpack.c.l.b16 %v198
        %v613 = vunpack.c.h.b16 %v198
        %v614 = vunpack.c.l.b16 %v199
        %v615 = vunpack.c.h.b16 %v199
        %v616 = vunpack.c.l.b16 %v200
        %v617 = vunpack.c.h.b16 %v200
        %v618 = vunpack.c.l.b16 %v201
        %v619 = vunpack.c.h.b16 %v201
        %v620 = vunpack.c.l.b16 %v202
        %v621 = vunpack.c.h.b16 %v202
        %v622 = vunpack.c.l.b16 %v203
        %v623 = vunpack.c.h.b16 %v203
        %v624 = vunpack.c.l.b16 %v204
        %v625 = vunpack.c.h.b16 %v204
        %v626 = vunpack.c.l.b16 %v205
        %v627 = vunpack.c.h.b16 %v205
        %v628 = vunpack.c.l.b16 %v206
        %v629 = vunpack.c.h.b16 %v206
        %v630 = vunpack.c.l.b16 %v207
        %v631 = vunpack.c.h.b16 %v207
        %v632 = vunpack.c.l.b16 %v208
        %v633 = vunpack.c.h.b16 %v208
        %v634 = vunpack.c.l.b16 %v209
        %v635 = vunpack.c.h.b16 %v209
        %v636 = vunpack.c.l.b16 %v210
        %v637 = vunpack.c.h.b16 %v210
        %v638 = vunpack.c.l.b16 %v211
        %v639 = vunpack.c.h.b16 %v211
        %v640 = vunpack.c.l.b16 %v212
        %v641 = vunpack.c.h.b16 %v212
        %v642 = vunpack.c.l.b16 %v213
        %v643 = vunpack.c.h.b16 %v213
        %v644 = vunpack.c.l.b16 %v214
        %v645 = vunpack.c.h.b16 %v214
        %v646 = vunpack.c.l.b16 %v215
        %v647 = vunpack.c.h.b16 %v215
        %v648 = vunpack.c.l.b16 %v216
        %v649 = vunpack.c.h.b16 %v216
        %v650 = vunpack.c.l.b16 %v217
        %v651 = vunpack.c.h.b16 %v217
        %v652 = vunpack.c.l.b16 %v218
        %v653 = vunpack.c.h.b16 %v218
        %v654 = vunpack.c.l.b16 %v219
        %v655 = vunpack.c.h.b16 %v219
        %v656 = vunpack.c.l.b16 %v220
        %v657 = vunpack.c.h.b16 %v220
        %v658 = vunpack.c.l.b16 %v221
        %v659 = vunpack.c.h.b16 %v221
        %v660 = vunpack.c.l.b16 %v222
        %v661 = vunpack.c.h.b16 %v222
        %v662 = vunpack.c.l.b16 %v223
        %v663 = vunpack.c.h.b16 %v223
        %v664 = vunpack.c.l.b16 %v224
        %v665 = vunpack.c.h.b16 %v224
        %v666 = vunpack.c.l.b16 %v225
        %v667 = vunpack.c.h.b16 %v225
        %v668 = vunpack.c.l.b16 %v226
        %v669 = vunpack.c.h.b16 %v226
        %v670 = vunpack.c.l.b16 %v227
        %v671 = vunpack.c.h.b16 %v227
        %v672 = vunpack.c.l.b16 %v228
        %v673 = vunpack.c.h.b16 %v228
        %v674 = vunpack.c.l.b16 %v229
        %v675 = vunpack.c.h.b16 %v229
        %v676 = vunpack.c.l.b16 %v230
        %v677 = vunpack.c.h.b16 %v230
        %v678 = vunpack.c.l.b16 %v231
        %v679 = vunpack.c.h.b16 %v231
        %v680 = vunpack.c.l.b16 %v232
        %v681 = vunpack.c.h.b16 %v232
        %v682 = vunpack.c.l.b16 %v233
        %v683 = vunpack.c.h.b16 %v233
        %v684 = vunpack.c.l.b16 %v234
        %v685 = vunpack.c.h.b16 %v234
        %v686 = vunpack.c.l.b16 %v235
        %v687 = vunpack.c.h.b16 %v235
        %v688 = vunpack.c.l.b16 %v236
        %v689 = vunpack.c.h.b16 %v236
        %v690 = vunpack.c.l.b16 %v237
        %v691 = vunpack.c.h.b16 %v237
        %v692 = vunpack.c.l.b16 %v238
        %v693 = vunpack.c.h.b16 %v238
        %v694 = vunpack.c.l.b16 %v239
        %v695 = vunpack.c.h.b16 %v239
        %v696 = vunpack.c.l.b16 %v240
        %v697 = vunpack.c.h.b16 %v240
        %v698 = vunpack.c.l.b16 %v241
        %v699 = vunpack.c.h.b16 %v241
        %v700 = vunpack.c.l.b16 %v242
        %v701 = vunpack.c.h.b16 %v242
        %v702 = vunpack.c.l.b16 %v243
        %v703 = vunpack.c.h.b16 %v243
        %v704 = vunpack.c.l.b16 %v244
        %v705 = vunpack.c.h.b16 %v244
        %v706 = vunpack.c.l.b16 %v245
        %v707 = vunpack.c.h.b16 %v245
        %v708 = vunpack.c.l.b16 %v246
        %v709 = vunpack.c.h.b16 %v246
        %v710 = vunpack.c.l.b16 %v247
        %v711 = vunpack.c.h.b16 %v247
        %v712 = vunpack.c.l.b16 %v248
        %v713 = vunpack.c.h.b16 %v248
        %v714 = vunpack.c.l.b16 %v249
        %v715 = vunpack.c.h.b16 %v249
        %v716 = vunpack.c.l.b16 %v250
        %v717 = vunpack.c.h.b16 %v250
        %v718 = vunpack.c.l.b16 %v251
        %v719 = vunpack.c.h.b16 %v251
        %v720 = vunpack.c.l.b16 %v252
        %v721 = vunpack.c.h.b16 %v252
        %v722 = vunpack.c.l.b16 %v253
        %v723 = vunpack.c.h.b16 %v253
        %v724 = vunpack.c.l.b16 %v254
        %v725 = vunpack.c.h.b16 %v254
        %v726 = vunpack.c.l.b16 %v255
        %v727 = vunpack.c.h.b16 %v255
        %v728 = vunpack.c.l.b16 %v256
        %v729 = vunpack.c.h.b16 %v256
        %v730 = vunpack.c.l.b16 %v257
        %v731 = vunpack.c.h.b16 %v257
        %v732 = vunpack.c.l.b16 %v258
        %v733 = vunpack.c.h.b16 %v258
        %v734 = vunpack.c.l.b16 %v259
        %v735 = vunpack.c.h.b16 %v259
        %v736 = vunpack.c.l.b16 %v260
        %v737 = vunpack.c.h.b16 %v260
        %v738 = vunpack.c.l.b16 %v261
        %v739 = vunpack.c.h.b16 %v261
        %v740 = vunpack.c.l.b16 %v262
        %v741 = vunpack.c.h.b16 %v262
        %v742 = vunpack.c.l.b16 %v263
        %v743 = vunpack.c.h.b16 %v263
        %v744 = vunpack.c.l.b16 %v264
        %v745 = vunpack.c.h.b16 %v264
        %v746 = vunpack.c.l.b16 %v265
        %v747 = vunpack.c.h.b16 %v265
        %v748 = vunpack.c.l.b16 %v266
        %v749 = vunpack.c.h.b16 %v266
        %v750 = vunpack.c.l.b16 %v267
        %v751 = vunpack.c.h.b16 %v267
        %v752 = vunpack.c.l.b16 %v268
        %v753 = vunpack.c.h.b16 %v268
        %v754 = vunpack.c.l.b16 %v269
        %v755 = vunpack.c.h.b16 %v269
        %v756 = vunpack.c.l.b16 %v270
        %v757 = vunpack.c.h.b16 %v270
        %v758 = vunpack.c.l.b16 %v271
        %v759 = vunpack.c.h.b16 %v271
        %v760 = vunpack.c.l.b16 %v272
        %v761 = vunpack.c.h.b16 %v272
        %v762 = vunpack.c.l.b16 %v273
        %v763 = vunpack.c.h.b16 %v273
        %v764 = vunpack.c.l.b16 %v274
        %v765 = vunpack.c.h.b16 %v274
        %v766 = vunpack.c.l.b16 %v275
        %v767 = vunpack.c.h.b16 %v275
        %v768 = vunpack.c.l.b16 %v276
        %v769 = vunpack.c.h.b16 %v276
        %v770 = vunpack.c.l.b16 %v277
        %v771 = vunpack.c.h.b16 %v277
        %v772 = vunpack.c.l.b16 %v278
        %v773 = vunpack.c.h.b16 %v278
        %v774 = vunpack.c.l.b16 %v279
        %v775 = vunpack.c.h.b16 %v279
        %v776 = vunpack.c.l.b16 %v280
        %v777 = vunpack.c.h.b16 %v280
        %v778 = vunpack.c.l.b16 %v281
        %v779 = vunpack.c.h.b16 %v281
        %v780 = vunpack.c.l.b16 %v282
        %v781 = vunpack.c.h.b16 %v282
        %v782 = vunpack.c.l.b16 %v283
        %v783 = vunpack.c.h.b16 %v283
        %v784 = vunpack.c.l.b16 %v284
        %v785 = vunpack.c.h.b16 %v284
        %v786 = vunpack.c.l.b16 %v285
        %v787 = vunpack.c.h.b16 %v285
        %v788 = vunpack.c.l.b16 %v286
        %v789 = vunpack.c.h.b16 %v286
        %v790 = vunpack.c.l.b16 %v287
        %v791 = vunpack.c.h.b16 %v287
        %v792 = vunpack.c.l.b16 %v288
        %v793 = vunpack.c.h.b16 %v288
        %v794 = vunpack.c.l.b16 %v289
        %v795 = vunpack.c.h.b16 %v289
        %v796 = vunpack.c.l.b16 %v290
        %v797 = vunpack.c.h.b16 %v290
        %v798 = vunpack.c.l.b16 %v291
        %v799 = vunpack.c.h.b16 %v291
        %v800 = vunpack.c.l.b16 %v292
        %v801 = vunpack.c.h.b16 %v292
        %v802 = vunpack.c.l.b16 %v293
        %v803 = vunpack.c.h.b16 %v293
        %v804 = vunpack.c.l.b16 %v294
        %v805 = vunpack.c.h.b16 %v294
        %v806 = vunpack.c.l.b16 %v295
        %v807 = vunpack.c.h.b16 %v295
        %v808 = vunpack.c.l.b16 %v296
        %v809 = vunpack.c.h.b16 %v296
        %v810 = vunpack.c.l.b16 %v297
        %v811 = vunpack.c.h.b16 %v297
        %v812 = vunpack.c.l.b16 %v298
        %v813 = vunpack.c.h.b16 %v298
        %v814 = vunpack.c.l.b16 %v299
        %v815 = vunpack.c.h.b16 %v299
        %v816 = vunpack.c.l.b16 %v300
        %v817 = vunpack.c.h.b16 %v300
        %v818 = vunpack.c.l.b16 %v301
        %v819 = vunpack.c.h.b16 %v301
        %v820 = vunpack.c.l.b16 %v302
        %v821 = vunpack.c.h.b16 %v302
        %v822 = vunpack.c.l.b16 %v303
        %v823 = vunpack.c.h.b16 %v303
        %v824 = vunpack.c.l.b16 %v304
        %v825 = vunpack.c.h.b16 %v304
        %v826 = vunpack.c.l.b16 %v305
        %v827 = vunpack.c.h.b16 %v305
        %v828 = vunpack.c.l.b16 %v306
        %v829 = vunpack.c.h.b16 %v306
        %v830 = vunpack.c.l.b16 %v307
        %v831 = vunpack.c.h.b16 %v307
        %v832 = vunpack.c.l.b16 %v308
        %v833 = vunpack.c.h.b16 %v308
        %v834 = vunpack.c.l.b16 %v309
        %v835 = vunpack.c.h.b16 %v309
        %v836 = vunpack.c.l.b16 %v310
        %v837 = vunpack.c.h.b16 %v310
        %v838 = vunpack.c.l.b16 %v311
        %v839 = vunpack.c.h.b16 %v311
        %v840 = vpack.c.b16 %v558, %v552
        %v841 = vpack.c.b16 %v559, %v553
        %v842 = vpack.c.b16 %v560, %v554
        %v843 = vpack.c.b16 %v561, %v555
        %v844 = vpack.c.b16 %v562, %v556
        %v845 = vpack.c.b16 %v563, %v557
        %v846 = vpack.c.b16 %v570, %v564
        %v847 = vpack.c.b16 %v571, %v565
        %v848 = vpack.c.b16 %v572, %v566
        %v849 = vpack.c.b16 %v573, %v567
        %v850 = vpack.c.b16 %v574, %v568
        %v851 = vpack.c.b16 %v575, %v569
        %v852 = vpack.c.b16 %v582, %v576
        %v853 = vpack.c.b16 %v583, %v577
        %v854 = vpack.c.b16 %v584, %v578
        %v855 = vpack.c.b16 %v585, %v579
        %v856 = vpack.c.b16 %v586, %v580
        %v857 = vpack.c.b16 %v587, %v581
        %v858 = vpack.c.b16 %v594, %v588
        %v859 = vpack.c.b16 %v595, %v589
        %v860 = vpack.c.b16 %v596, %v590
        %v861 = vpack.c.b16 %v597, %v591
        %v862 = vpack.c.b16 %v598, %v592
        %v863 = vpack.c.b16 %v599, %v593
        %v864 = vpack.c.b16 %v606, %v600
        %v865 = vpack.c.b16 %v607, %v601
        %v866 = vpack.c.b16 %v608, %v602
        %v867 = vpack.c.b16 %v609, %v603
        %v868 = vpack.c.b16 %v610, %v604
        %v869 = vpack.c.b16 %v611, %v605
        %v870 = vpack.c.b16 %v618, %v612
        %v871 = vpack.c.b16 %v619, %v613
        %v872 = vpack.c.b16 %v620, %v614
        %v873 = vpack.c.b16 %v621, %v615
        %v874 = vpack.c.b16 %v622, %v616
        %v875 = vpack.c.b16 %v623, %v617
        %v876 = vpack.c.b16 %v630, %v624
        %v877 = vpack.c.b16 %v631, %v625
        %v878 = vpack.c.b16 %v632, %v626
        %v879 = vpack.c.b16 %v633, %v627
        %v880 = vpack.c.b16 %v634, %v628
        %v881 = vpack.c.b16 %v635, %v629
        %v882 = vpack.c.b16 %v642, %v636
        %v883 = vpack.c.b16 %v643, %v637
        %v884 = vpack.c.b16 %v644, %v638
        %v885 = vpack.c.b16 %v645, %v639
        %v886 = vpack.c.b16 %v646, %v640
        %v887 = vpack.c.b16 %v647, %v641
        %v888 = vpack.c.b16 %v654, %v648
        %v889 = vpack.c.b16 %v655, %v649
        %v890 = vpack.c.b16 %v656, %v650
        %v891 = vpack.c.b16 %v657, %v651
        %v892 = vpack.c.b16 %v658, %v652
        %v893 = vpack.c.b16 %v659, %v653
        %v894 = vpack.c.b16 %v666, %v660
        %v895 = vpack.c.b16 %v667, %v661
        %v896 = vpack.c.b16 %v668, %v662
        %v897 = vpack.c.b16 %v669, %v663
        %v898 = vpack.c.b16 %v670, %v664
        %v899 = vpack.c.b16 %v671, %v665
        %v900 = vpack.c.b16 %v678, %v672
        %v901 = vpack.c.b16 %v679, %v673
        %v902 = vpack.c.b16 %v680, %v674
        %v903 = vpack.c.b16 %v681, %v675
        %v904 = vpack.c.b16 %v682, %v676
        %v905 = vpack.c.b16 %v683, %v677
        %v906 = vpack.c.b16 %v690, %v684
        %v907 = vpack.c.b16 %v691, %v685
        %v908 = vpack.c.b16 %v692, %v686
        %v909 = vpack.c.b16 %v693, %v687
        %v910 = vpack.c.b16 %v694, %v688
        %v911 = vpack.c.b16 %v695, %v689
        %v912 = vpack.c.b16 %v702, %v696
        %v913 = vpack.c.b16 %v703, %v697
        %v914 = vpack.c.b16 %v704, %v698
        %v915 = vpack.c.b16 %v705, %v699
        %v916 = vpack.c.b16 %v706, %v700
        %v917 = vpack.c.b16 %v707, %v701
        %v918 = vpack.c.b16 %v714, %v708
        %v919 = vpack.c.b16 %v715, %v709
        %v920 = vpack.c.b16 %v716, %v710
        %v921 = vpack.c.b16 %v717, %v711
        %v922 = vpack.c.b16 %v718, %v712
        %v923 = vpack.c.b16 %v719, %v713
        %v924 = vpack.c.b16 %v726, %v720
        %v925 = vpack.c.b16 %v727, %v721
        %v926 = vpack.c.b16 %v728, %v722
        %v927 = vpack.c.b16 %v729, %v723
        %v928 = vpack.c.b16 %v730, %v724
        %v929 = vpack.c.b16 %v731, %v725
        %v930 = vpack.c.b16 %v738, %v732
        %v931 = vpack.c.b16 %v739, %v733
        %v932 = vpack.c.b16 %v740, %v734
        %v933 = vpack.c.b16 %v741, %v735
        %v934 = vpack.c.b16 %v742, %v736
        %v935 = vpack.c.b16 %v743, %v737
        %v936 = vpack.c.b16 %v750, %v744
        %v937 = vpack.c.b16 %v751, %v745
        %v938 = vpack.c.b16 %v752, %v746
        %v939 = vpack.c.b16 %v753, %v747
        %v940 = vpack.c.b16 %v754, %v748
        %v941 = vpack.c.b16 %v755, %v749
        %v942 = vpack.c.b16 %v762, %v756
        %v943 = vpack.c.b16 %v763, %v757
        %v944 = vpack.c.b16 %v764, %v758
        %v945 = vpack.c.b16 %v765, %v759
        %v946 = vpack.c.b16 %v766, %v760
        %v947 = vpack.c.b16 %v767, %v761
        %v948 = vpack.c.b16 %v774, %v768
        %v949 = vpack.c.b16 %v775, %v769
        %v950 = vpack.c.b16 %v776, %v770
        %v951 = vpack.c.b16 %v777, %v771
        %v952 = vpack.c.b16 %v778, %v772
        %v953 = vpack.c.b16 %v779, %v773
        %v954 = vpack.c.b16 %v786, %v780
        %v955 = vpack.c.b16 %v787, %v781
        %v956 = vpack.c.b16 %v788, %v782
        %v957 = vpack.c.b16 %v789, %v783
        %v958 = vpack.c.b16 %v790, %v784
        %v959 = vpack.c.b16 %v791, %v785
        %v960 = vpack.c.b16 %v798, %v792
        %v961 = vpack.c.b16 %v799, %v793
        %v962 = vpack.c.b16 %v800, %v794
        %v963 = vpack.c.b16 %v801, %v795
        %v964 = vpack.c.b16 %v802, %v796
        %v965 = vpack.c.b16 %v803, %v797
        %v966 = vpack.c.b16 %v810, %v804
        %v967 = vpack.c.b16 %v811, %v805
        %v968 = vpack.c.b16 %v812, %v806
        %v969 = vpack.c.b16 %v813, %v807
        %v970 = vpack.c.b16 %v814, %v808
        %v971 = vpack.c.b16 %v815, %v809
        %v972 = vpack.c.b16 %v822, %v816
        %v973 = vpack.c.b16 %v823, %v817
        %v974 = vpack.c.b16 %v824, %v818
        %v975 = vpack.c.b16 %v825, %v819
        %v976 = vpack.c.b16 %v826, %v820
        %v977 = vpack.c.b16 %v827, %v821
        %v978 = vpack.c.b16 %v834, %v828
        %v979 = vpack.c.b16 %v835, %v829
        %v980 = vpack.c.b16 %v836, %v830
        %v981 = vpack.c.b16 %v837, %v831
        %v982 = vpack.c.b16 %v838, %v832
        %v983 = vpack.c.b16 %v839, %v833
        %v1224 = vunpack.c.l.b16 %v312
        %v1225 = vunpack.c.l.b16 %v313
        %v1226 = vunpack.c.l.b16 %v314
        %v1227 = vunpack.c.l.b16 %v315
        %v1228 = vunpack.c.l.b16 %v316
        %v1229 = vunpack.c.l.b16 %v317
        %v1230 = vunpack.c.l.b16 %v318
        %v1231 = vunpack.c.l.b16 %v319
        %v1232 = vunpack.c.l.b16 %v320
        %v1233 = vunpack.c.l.b16 %v321
        %v1234 = vunpack.c.l.b16 %v322
        %v1235 = vunpack.c.l.b16 %v323
        %v1236 = vunpack.c.l.b16 %v324
        %v1237 = vunpack.c.l.b16 %v325
        %v1238 = vunpack.c.l.b16 %v326
        %v1239 = vunpack.c.l.b16 %v327
        %v1240 = vunpack.c.l.b16 %v328
        %v1241 = vunpack.c.l.b16 %v329
        %v1242 = vunpack.c.l.b16 %v330
        %v1243 = vunpack.c.l.b16 %v331
        %v1244 = vunpack.c.l.b16 %v332
        %v1245 = vunpack.c.l.b16 %v333
        %v1246 = vunpack.c.l.b16 %v334
        %v1247 = vunpack.c.l.b16 %v335
        %v1248 = vunpack.c.l.b16 %v336
        %v1249 = vunpack.c.l.b16 %v337
        %v1250 = vunpack.c.l.b16 %v338
        %v1251 = vunpack.c.l.b16 %v339
        %v1252 = vunpack.c.l.b16 %v340
        %v1253 = vunpack.c.l.b16 %v341
        %v1254 = vunpack.c.l.b16 %v342
        %v1255 = vunpack.c.l.b16 %v343
        %v1256 = vunpack.c.l.b16 %v344
        %v1257 = vunpack.c.l.b16 %v345
        %v1258 = vunpack.c.l.b16 %v346
        %v1259 = vunpack.c.l.b16 %v347
        %v1260 = vunpack.c.l.b16 %v348
        %v1261 = vunpack.c.l.b16 %v349
        %v1262 = vunpack.c.l.b16 %v350
        %v1263 = vunpack.c.l.b16 %v351
        %v1264 = vunpack.c.l.b16 %v352
        %v1265 = vunpack.c.l.b16 %v353
        %v1266 = vunpack.c.l.b16 %v354
        %v1267 = vunpack.c.l.b16 %v355
        %v1268 = vunpack.c.l.b16 %v356
        %v1269 = vunpack.c.l.b16 %v357
        %v1270 = vunpack.c.l.b16 %v358
        %v1271 = vunpack.c.l.b16 %v359
        %v1272 = vunpack.c.l.b16 %v360
        %v1273 = vunpack.c.l.b16 %v361
        %v1274 = vunpack.c.l.b16 %v362
        %v1275 = vunpack.c.l.b16 %v363
        %v1276 = vunpack.c.l.b16 %v364
        %v1277 = vunpack.c.l.b16 %v365
        %v1278 = vunpack.c.l.b16 %v366
        %v1279 = vunpack.c.l.b16 %v367
        %v1280 = vunpack.c.l.b16 %v368
        %v1281 = vunpack.c.l.b16 %v369
        %v1282 = vunpack.c.l.b16 %v370
        %v1283 = vunpack.c.l.b16 %v371
        %v1284 = vunpack.c.l.b16 %v372
        %v1285 = vunpack.c.l.b16 %v373
        %v1286 = vunpack.c.l.b16 %v374
        %v1287 = vunpack.c.l.b16 %v375
        %v1288 = vunpack.c.l.b16 %v376
        %v1289 = vunpack.c.l.b16 %v377
        %v1290 = vunpack.c.l.b16 %v378
        %v1291 = vunpack.c.l.b16 %v379
        %v1292 = vunpack.c.l.b16 %v380
        %v1293 = vunpack.c.l.b16 %v381
        %v1294 = vunpack.c.l.b16 %v382
        %v1295 = vunpack.c.l.b16 %v383
        %v1296 = vunpack.c.l.b16 %v384
        %v1297 = vunpack.c.l.b16 %v385
        %v1298 = vunpack.c.l.b16 %v386
        %v1299 = vunpack.c.l.b16 %v387
        %v1300 = vunpack.c.l.b16 %v388
        %v1301 = vunpack.c.l.b16 %v389
        %v1302 = vunpack.c.l.b16 %v390
        %v1303 = vunpack.c.l.b16 %v391
        %v1304 = vunpack.c.l.b16 %v392
        %v1305 = vunpack.c.l.b16 %v393
        %v1306 = vunpack.c.l.b16 %v394
        %v1307 = vunpack.c.l.b16 %v395
        %v1308 = vunpack.c.l.b16 %v396
        %v1309 = vunpack.c.l.b16 %v397
        %v1310 = vunpack.c.l.b16 %v398
        %v1311 = vunpack.c.l.b16 %v399
        %v1312 = vunpack.c.l.b16 %v400
        %v1313 = vunpack.c.l.b16 %v401
        %v1314 = vunpack.c.l.b16 %v402
        %v1315 = vunpack.c.l.b16 %v403
        %v1316 = vunpack.c.l.b16 %v404
        %v1317 = vunpack.c.l.b16 %v405
        %v1318 = vunpack.c.l.b16 %v406
        %v1319 = vunpack.c.l.b16 %v407
        %v1320 = vpack.c.b16 %v1225, %v1224
        %v1321 = vpack.c.b16 %v1227, %v1226
        %v1322 = vpack.c.b16 %v1229, %v1228
        %v1323 = vpack.c.b16 %v1231, %v1230
        %v1324 = vpack.c.b16 %v1233, %v1232
        %v1325 = vpack.c.b16 %v1235, %v1234
        %v1326 = vpack.c.b16 %v1237, %v1236
        %v1327 = vpack.c.b16 %v1239, %v1238
        %v1328 = vpack.c.b16 %v1241, %v1240
        %v1329 = vpack.c.b16 %v1243, %v1242
        %v1330 = vpack.c.b16 %v1245, %v1244
        %v1331 = vpack.c.b16 %v1247, %v1246
        %v1332 = vpack.c.b16 %v1249, %v1248
        %v1333 = vpack.c.b16 %v1251, %v1250
        %v1334 = vpack.c.b16 %v1253, %v1252
        %v1335 = vpack.c.b16 %v1255, %v1254
        %v1336 = vpack.c.b16 %v1257, %v1256
        %v1337 = vpack.c.b16 %v1259, %v1258
        %v1338 = vpack.c.b16 %v1261, %v1260
        %v1339 = vpack.c.b16 %v1263, %v1262
        %v1340 = vpack.c.b16 %v1265, %v1264
        %v1341 = vpack.c.b16 %v1267, %v1266
        %v1342 = vpack.c.b16 %v1269, %v1268
        %v1343 = vpack.c.b16 %v1271, %v1270
        %v1344 = vpack.c.b16 %v1273, %v1272
        %v1345 = vpack.c.b16 %v1275, %v1274
        %v1346 = vpack.c.b16 %v1277, %v1276
        %v1347 = vpack.c.b16 %v1279, %v1278
        %v1348 = vpack.c.b16 %v1281, %v1280
        %v1349 = vpack.c.b16 %v1283, %v1282
        %v1350 = vpack.c.b16 %v1285, %v1284
        %v1351 = vpack.c.b16 %v1287, %v1286
        %v1352 = vpack.c.b16 %v1289, %v1288
        %v1353 = vpack.c.b16 %v1291, %v1290
        %v1354 = vpack.c.b16 %v1293, %v1292
        %v1355 = vpack.c.b16 %v1295, %v1294
        %v1356 = vpack.c.b16 %v1297, %v1296
        %v1357 = vpack.c.b16 %v1299, %v1298
        %v1358 = vpack.c.b16 %v1301, %v1300
        %v1359 = vpack.c.b16 %v1303, %v1302
        %v1360 = vpack.c.b16 %v1305, %v1304
        %v1361 = vpack.c.b16 %v1307, %v1306
        %v1362 = vpack.c.b16 %v1309, %v1308
        %v1363 = vpack.c.b16 %v1311, %v1310
        %v1364 = vpack.c.b16 %v1313, %v1312
        %v1365 = vpack.c.b16 %v1315, %v1314
        %v1366 = vpack.c.b16 %v1317, %v1316
        %v1367 = vpack.c.b16 %v1319, %v1318
        %1416 = vmatpush.bf16.msra.mxu0 %v1327
        %1417 = vmatpush.bf16.msra.mxu0 %v1326
        %1418 = vmatpush.bf16.msra.mxu0 %v1325
        %1419 = vmatpush.bf16.msra.mxu0 %v1324
        %1420 = vmatpush.bf16.msra.mxu0 %v1323
        %1421 = vmatpush.bf16.msra.mxu0 %v1322
        %1422 = vmatpush.bf16.msra.mxu0 %v1321
        %1423 = vmatpush.bf16.msra.mxu0 %v1320
        %1424 = vmatmul.bf16.gmra.mxu0 %v840
        %v1425 = vpop.f32.mrf.mxu0
        %v1426 = vadd.f32 0.0, %v1425
        %v1427 = vpop.f32.mrf.mxu0
        %v1428 = vadd.f32 0.0, %v1427
        %1429 = vmatmul.bf16.gmra.mxu0 %v846
        %v1430 = vpop.f32.mrf.mxu0
        %v1431 = vadd.f32 0.0, %v1430
        %v1432 = vpop.f32.mrf.mxu0
        %v1433 = vadd.f32 0.0, %v1432
        %1434 = vmatmul.bf16.gmra.mxu0 %v852
        %v1435 = vpop.f32.mrf.mxu0
        %v1436 = vadd.f32 0.0, %v1435
        %v1437 = vpop.f32.mrf.mxu0
        %v1438 = vadd.f32 0.0, %v1437
        %1439 = vmatmul.bf16.gmra.mxu0 %v858
        %v1440 = vpop.f32.mrf.mxu0
        %v1441 = vadd.f32 0.0, %v1440
        %v1442 = vpop.f32.mrf.mxu0
        %v1443 = vadd.f32 0.0, %v1442
        %1444 = vmatmul.bf16.gmra.mxu0 %v864
        %v1445 = vpop.f32.mrf.mxu0
        %v1446 = vadd.f32 0.0, %v1445
        %v1447 = vpop.f32.mrf.mxu0
        %v1448 = vadd.f32 0.0, %v1447
        %1449 = vmatmul.bf16.gmra.mxu0 %v870
        %v1450 = vpop.f32.mrf.mxu0
        %v1451 = vadd.f32 0.0, %v1450
        %v1452 = vpop.f32.mrf.mxu0
        %v1453 = vadd.f32 0.0, %v1452
        %1454 = vmatmul.bf16.gmra.mxu0 %v876
        %v1455 = vpop.f32.mrf.mxu0
        %v1456 = vadd.f32 0.0, %v1455
        %v1457 = vpop.f32.mrf.mxu0
        %v1458 = vadd.f32 0.0, %v1457
        %1459 = vmatmul.bf16.gmra.mxu0 %v882
        %v1460 = vpop.f32.mrf.mxu0
        %v1461 = vadd.f32 0.0, %v1460
        %v1462 = vpop.f32.mrf.mxu0
        %v1463 = vadd.f32 0.0, %v1462
        %1464 = vmatmul.bf16.gmra.mxu0 %v888
        %v1465 = vpop.f32.mrf.mxu0
        %v1466 = vadd.f32 0.0, %v1465
        %v1467 = vpop.f32.mrf.mxu0
        %v1468 = vadd.f32 0.0, %v1467
        %1469 = vmatmul.bf16.gmra.mxu0 %v894
        %v1470 = vpop.f32.mrf.mxu0
        %v1471 = vadd.f32 0.0, %v1470
        %v1472 = vpop.f32.mrf.mxu0
        %v1473 = vadd.f32 0.0, %v1472
        %1474 = vmatmul.bf16.gmra.mxu0 %v900
        %v1475 = vpop.f32.mrf.mxu0
        %v1476 = vadd.f32 0.0, %v1475
        %v1477 = vpop.f32.mrf.mxu0
        %v1478 = vadd.f32 0.0, %v1477
        %1479 = vmatmul.bf16.gmra.mxu0 %v906
        %v1480 = vpop.f32.mrf.mxu0
        %v1481 = vadd.f32 0.0, %v1480
        %v1482 = vpop.f32.mrf.mxu0
        %v1483 = vadd.f32 0.0, %v1482
        %1484 = vmatmul.bf16.gmra.mxu0 %v912
        %v1485 = vpop.f32.mrf.mxu0
        %v1486 = vadd.f32 0.0, %v1485
        %v1487 = vpop.f32.mrf.mxu0
        %v1488 = vadd.f32 0.0, %v1487
        %1489 = vmatmul.bf16.gmra.mxu0 %v918
        %v1490 = vpop.f32.mrf.mxu0
        %v1491 = vadd.f32 0.0, %v1490
        %v1492 = vpop.f32.mrf.mxu0
        %v1493 = vadd.f32 0.0, %v1492
        %1494 = vmatmul.bf16.gmra.mxu0 %v924
        %v1495 = vpop.f32.mrf.mxu0
        %v1496 = vadd.f32 0.0, %v1495
        %v1497 = vpop.f32.mrf.mxu0
        %v1498 = vadd.f32 0.0, %v1497
        %1499 = vmatmul.bf16.gmra.mxu0 %v930
        %v1500 = vpop.f32.mrf.mxu0
        %v1501 = vadd.f32 0.0, %v1500
        %v1502 = vpop.f32.mrf.mxu0
        %v1503 = vadd.f32 0.0, %v1502
        %1504 = vmatmul.bf16.gmra.mxu0 %v936
        %v1505 = vpop.f32.mrf.mxu0
        %v1506 = vadd.f32 0.0, %v1505
        %v1507 = vpop.f32.mrf.mxu0
        %v1508 = vadd.f32 0.0, %v1507
        %1509 = vmatmul.bf16.gmra.mxu0 %v942
        %v1510 = vpop.f32.mrf.mxu0
        %v1511 = vadd.f32 0.0, %v1510
        %v1512 = vpop.f32.mrf.mxu0
        %v1513 = vadd.f32 0.0, %v1512
        %1514 = vmatmul.bf16.gmra.mxu0 %v948
        %v1515 = vpop.f32.mrf.mxu0
        %v1516 = vadd.f32 0.0, %v1515
        %v1517 = vpop.f32.mrf.mxu0
        %v1518 = vadd.f32 0.0, %v1517
        %1519 = vmatmul.bf16.gmra.mxu0 %v954
        %v1520 = vpop.f32.mrf.mxu0
        %v1521 = vadd.f32 0.0, %v1520
        %v1522 = vpop.f32.mrf.mxu0
        %v1523 = vadd.f32 0.0, %v1522
        %1524 = vmatmul.bf16.gmra.mxu0 %v960
        %v1525 = vpop.f32.mrf.mxu0
        %v1526 = vadd.f32 0.0, %v1525
        %v1527 = vpop.f32.mrf.mxu0
        %v1528 = vadd.f32 0.0, %v1527
        %1529 = vmatmul.bf16.gmra.mxu0 %v966
        %v1530 = vpop.f32.mrf.mxu0
        %v1531 = vadd.f32 0.0, %v1530
        %v1532 = vpop.f32.mrf.mxu0
        %v1533 = vadd.f32 0.0, %v1532
        %1534 = vmatmul.bf16.gmra.mxu0 %v972
        %v1535 = vpop.f32.mrf.mxu0
        %v1536 = vadd.f32 0.0, %v1535
        %v1537 = vpop.f32.mrf.mxu0
        %v1538 = vadd.f32 0.0, %v1537
        %1539 = vmatmul.bf16.gmra.mxu0 %v978
        %v1540 = vpop.f32.mrf.mxu0
        %v1541 = vadd.f32 0.0, %v1540
        %v1542 = vpop.f32.mrf.mxu0
        %v1543 = vadd.f32 0.0, %v1542
        %1544 = vdwg.mxu0
        %1545 = vmatpush.bf16.msra.mxu0 %v1335
        %1546 = vmatpush.bf16.msra.mxu0 %v1334
        %1547 = vmatpush.bf16.msra.mxu0 %v1333
        %1548 = vmatpush.bf16.msra.mxu0 %v1332
        %1549 = vmatpush.bf16.msra.mxu0 %v1331
        %1550 = vmatpush.bf16.msra.mxu0 %v1330
        %1551 = vmatpush.bf16.msra.mxu0 %v1329
        %1552 = vmatpush.bf16.msra.mxu0 %v1328
        %1553 = vmatmul.bf16.gmra.mxu0 %v841
        %v1554 = vpop.f32.mrf.mxu0
        %v1555 = vadd.f32 %v1426, %v1554
        %v1556 = vpop.f32.mrf.mxu0
        %v1557 = vadd.f32 %v1428, %v1556
        %1558 = vmatmul.bf16.gmra.mxu0 %v847
        %v1559 = vpop.f32.mrf.mxu0
        %v1560 = vadd.f32 %v1431, %v1559
        %v1561 = vpop.f32.mrf.mxu0
        %v1562 = vadd.f32 %v1433, %v1561
        %1563 = vmatmul.bf16.gmra.mxu0 %v853
        %v1564 = vpop.f32.mrf.mxu0
        %v1565 = vadd.f32 %v1436, %v1564
        %v1566 = vpop.f32.mrf.mxu0
        %v1567 = vadd.f32 %v1438, %v1566
        %1568 = vmatmul.bf16.gmra.mxu0 %v859
        %v1569 = vpop.f32.mrf.mxu0
        %v1570 = vadd.f32 %v1441, %v1569
        %v1571 = vpop.f32.mrf.mxu0
        %v1572 = vadd.f32 %v1443, %v1571
        %1573 = vmatmul.bf16.gmra.mxu0 %v865
        %v1574 = vpop.f32.mrf.mxu0
        %v1575 = vadd.f32 %v1446, %v1574
        %v1576 = vpop.f32.mrf.mxu0
        %v1577 = vadd.f32 %v1448, %v1576
        %1578 = vmatmul.bf16.gmra.mxu0 %v871
        %v1579 = vpop.f32.mrf.mxu0
        %v1580 = vadd.f32 %v1451, %v1579
        %v1581 = vpop.f32.mrf.mxu0
        %v1582 = vadd.f32 %v1453, %v1581
        %1583 = vmatmul.bf16.gmra.mxu0 %v877
        %v1584 = vpop.f32.mrf.mxu0
        %v1585 = vadd.f32 %v1456, %v1584
        %v1586 = vpop.f32.mrf.mxu0
        %v1587 = vadd.f32 %v1458, %v1586
        %1588 = vmatmul.bf16.gmra.mxu0 %v883
        %v1589 = vpop.f32.mrf.mxu0
        %v1590 = vadd.f32 %v1461, %v1589
        %v1591 = vpop.f32.mrf.mxu0
        %v1592 = vadd.f32 %v1463, %v1591
        %1593 = vmatmul.bf16.gmra.mxu0 %v889
        %v1594 = vpop.f32.mrf.mxu0
        %v1595 = vadd.f32 %v1466, %v1594
        %v1596 = vpop.f32.mrf.mxu0
        %v1597 = vadd.f32 %v1468, %v1596
        %1598 = vmatmul.bf16.gmra.mxu0 %v895
        %v1599 = vpop.f32.mrf.mxu0
        %v1600 = vadd.f32 %v1471, %v1599
        %v1601 = vpop.f32.mrf.mxu0
        %v1602 = vadd.f32 %v1473, %v1601
        %1603 = vmatmul.bf16.gmra.mxu0 %v901
        %v1604 = vpop.f32.mrf.mxu0
        %v1605 = vadd.f32 %v1476, %v1604
        %v1606 = vpop.f32.mrf.mxu0
        %v1607 = vadd.f32 %v1478, %v1606
        %1608 = vmatmul.bf16.gmra.mxu0 %v907
        %v1609 = vpop.f32.mrf.mxu0
        %v1610 = vadd.f32 %v1481, %v1609
        %v1611 = vpop.f32.mrf.mxu0
        %v1612 = vadd.f32 %v1483, %v1611
        %1613 = vmatmul.bf16.gmra.mxu0 %v913
        %v1614 = vpop.f32.mrf.mxu0
        %v1615 = vadd.f32 %v1486, %v1614
        %v1616 = vpop.f32.mrf.mxu0
        %v1617 = vadd.f32 %v1488, %v1616
        %1618 = vmatmul.bf16.gmra.mxu0 %v919
        %v1619 = vpop.f32.mrf.mxu0
        %v1620 = vadd.f32 %v1491, %v1619
        %v1621 = vpop.f32.mrf.mxu0
        %v1622 = vadd.f32 %v1493, %v1621
        %1623 = vmatmul.bf16.gmra.mxu0 %v925
        %v1624 = vpop.f32.mrf.mxu0
        %v1625 = vadd.f32 %v1496, %v1624
        %v1626 = vpop.f32.mrf.mxu0
        %v1627 = vadd.f32 %v1498, %v1626
        %1628 = vmatmul.bf16.gmra.mxu0 %v931
        %v1629 = vpop.f32.mrf.mxu0
        %v1630 = vadd.f32 %v1501, %v1629
        %v1631 = vpop.f32.mrf.mxu0
        %v1632 = vadd.f32 %v1503, %v1631
        %1633 = vmatmul.bf16.gmra.mxu0 %v937
        %v1634 = vpop.f32.mrf.mxu0
        %v1635 = vadd.f32 %v1506, %v1634
        %v1636 = vpop.f32.mrf.mxu0
        %v1637 = vadd.f32 %v1508, %v1636
        %1638 = vmatmul.bf16.gmra.mxu0 %v943
        %v1639 = vpop.f32.mrf.mxu0
        %v1640 = vadd.f32 %v1511, %v1639
        %v1641 = vpop.f32.mrf.mxu0
        %v1642 = vadd.f32 %v1513, %v1641
        %1643 = vmatmul.bf16.gmra.mxu0 %v949
        %v1644 = vpop.f32.mrf.mxu0
        %v1645 = vadd.f32 %v1516, %v1644
        %v1646 = vpop.f32.mrf.mxu0
        %v1647 = vadd.f32 %v1518, %v1646
        %1648 = vmatmul.bf16.gmra.mxu0 %v955
        %v1649 = vpop.f32.mrf.mxu0
        %v1650 = vadd.f32 %v1521, %v1649
        %v1651 = vpop.f32.mrf.mxu0
        %v1652 = vadd.f32 %v1523, %v1651
        %1653 = vmatmul.bf16.gmra.mxu0 %v961
        %v1654 = vpop.f32.mrf.mxu0
        %v1655 = vadd.f32 %v1526, %v1654
        %v1656 = vpop.f32.mrf.mxu0
        %v1657 = vadd.f32 %v1528, %v1656
        %1658 = vmatmul.bf16.gmra.mxu0 %v967
        %v1659 = vpop.f32.mrf.mxu0
        %v1660 = vadd.f32 %v1531, %v1659
        %v1661 = vpop.f32.mrf.mxu0
        %v1662 = vadd.f32 %v1533, %v1661
        %1663 = vmatmul.bf16.gmra.mxu0 %v973
        %v1664 = vpop.f32.mrf.mxu0
        %v1665 = vadd.f32 %v1536, %v1664
        %v1666 = vpop.f32.mrf.mxu0
        %v1667 = vadd.f32 %v1538, %v1666
        %1668 = vmatmul.bf16.gmra.mxu0 %v979
        %v1669 = vpop.f32.mrf.mxu0
        %v1670 = vadd.f32 %v1541, %v1669
        %v1671 = vpop.f32.mrf.mxu0
        %v1672 = vadd.f32 %v1543, %v1671
        %1673 = vdwg.mxu0
        %1674 = vmatpush.bf16.msra.mxu0 %v1343
        %1675 = vmatpush.bf16.msra.mxu0 %v1342
        %1676 = vmatpush.bf16.msra.mxu0 %v1341
        %1677 = vmatpush.bf16.msra.mxu0 %v1340
        %1678 = vmatpush.bf16.msra.mxu0 %v1339
        %1679 = vmatpush.bf16.msra.mxu0 %v1338
        %1680 = vmatpush.bf16.msra.mxu0 %v1337
        %1681 = vmatpush.bf16.msra.mxu0 %v1336
        %1682 = vmatmul.bf16.gmra.mxu0 %v842
        %v1683 = vpop.f32.mrf.mxu0
        %v1684 = vadd.f32 %v1555, %v1683
        %v1685 = vpop.f32.mrf.mxu0
        %v1686 = vadd.f32 %v1557, %v1685
        %1687 = vmatmul.bf16.gmra.mxu0 %v848
        %v1688 = vpop.f32.mrf.mxu0
        %v1689 = vadd.f32 %v1560, %v1688
        %v1690 = vpop.f32.mrf.mxu0
        %v1691 = vadd.f32 %v1562, %v1690
        %1692 = vmatmul.bf16.gmra.mxu0 %v854
        %v1693 = vpop.f32.mrf.mxu0
        %v1694 = vadd.f32 %v1565, %v1693
        %v1695 = vpop.f32.mrf.mxu0
        %v1696 = vadd.f32 %v1567, %v1695
        %1697 = vmatmul.bf16.gmra.mxu0 %v860
        %v1698 = vpop.f32.mrf.mxu0
        %v1699 = vadd.f32 %v1570, %v1698
        %v1700 = vpop.f32.mrf.mxu0
        %v1701 = vadd.f32 %v1572, %v1700
        %1702 = vmatmul.bf16.gmra.mxu0 %v866
        %v1703 = vpop.f32.mrf.mxu0
        %v1704 = vadd.f32 %v1575, %v1703
        %v1705 = vpop.f32.mrf.mxu0
        %v1706 = vadd.f32 %v1577, %v1705
        %1707 = vmatmul.bf16.gmra.mxu0 %v872
        %v1708 = vpop.f32.mrf.mxu0
        %v1709 = vadd.f32 %v1580, %v1708
        %v1710 = vpop.f32.mrf.mxu0
        %v1711 = vadd.f32 %v1582, %v1710
        %1712 = vmatmul.bf16.gmra.mxu0 %v878
        %v1713 = vpop.f32.mrf.mxu0
        %v1714 = vadd.f32 %v1585, %v1713
        %v1715 = vpop.f32.mrf.mxu0
        %v1716 = vadd.f32 %v1587, %v1715
        %1717 = vmatmul.bf16.gmra.mxu0 %v884
        %v1718 = vpop.f32.mrf.mxu0
        %v1719 = vadd.f32 %v1590, %v1718
        %v1720 = vpop.f32.mrf.mxu0
        %v1721 = vadd.f32 %v1592, %v1720
        %1722 = vmatmul.bf16.gmra.mxu0 %v890
        %v1723 = vpop.f32.mrf.mxu0
        %v1724 = vadd.f32 %v1595, %v1723
        %v1725 = vpop.f32.mrf.mxu0
        %v1726 = vadd.f32 %v1597, %v1725
        %1727 = vmatmul.bf16.gmra.mxu0 %v896
        %v1728 = vpop.f32.mrf.mxu0
        %v1729 = vadd.f32 %v1600, %v1728
        %v1730 = vpop.f32.mrf.mxu0
        %v1731 = vadd.f32 %v1602, %v1730
        %1732 = vmatmul.bf16.gmra.mxu0 %v902
        %v1733 = vpop.f32.mrf.mxu0
        %v1734 = vadd.f32 %v1605, %v1733
        %v1735 = vpop.f32.mrf.mxu0
        %v1736 = vadd.f32 %v1607, %v1735
        %1737 = vmatmul.bf16.gmra.mxu0 %v908
        %v1738 = vpop.f32.mrf.mxu0
        %v1739 = vadd.f32 %v1610, %v1738
        %v1740 = vpop.f32.mrf.mxu0
        %v1741 = vadd.f32 %v1612, %v1740
        %1742 = vmatmul.bf16.gmra.mxu0 %v914
        %v1743 = vpop.f32.mrf.mxu0
        %v1744 = vadd.f32 %v1615, %v1743
        %v1745 = vpop.f32.mrf.mxu0
        %v1746 = vadd.f32 %v1617, %v1745
        %1747 = vmatmul.bf16.gmra.mxu0 %v920
        %v1748 = vpop.f32.mrf.mxu0
        %v1749 = vadd.f32 %v1620, %v1748
        %v1750 = vpop.f32.mrf.mxu0
        %v1751 = vadd.f32 %v1622, %v1750
        %1752 = vmatmul.bf16.gmra.mxu0 %v926
        %v1753 = vpop.f32.mrf.mxu0
        %v1754 = vadd.f32 %v1625, %v1753
        %v1755 = vpop.f32.mrf.mxu0
        %v1756 = vadd.f32 %v1627, %v1755
        %1757 = vmatmul.bf16.gmra.mxu0 %v932
        %v1758 = vpop.f32.mrf.mxu0
        %v1759 = vadd.f32 %v1630, %v1758
        %v1760 = vpop.f32.mrf.mxu0
        %v1761 = vadd.f32 %v1632, %v1760
        %1762 = vmatmul.bf16.gmra.mxu0 %v938
        %v1763 = vpop.f32.mrf.mxu0
        %v1764 = vadd.f32 %v1635, %v1763
        %v1765 = vpop.f32.mrf.mxu0
        %v1766 = vadd.f32 %v1637, %v1765
        %1767 = vmatmul.bf16.gmra.mxu0 %v944
        %v1768 = vpop.f32.mrf.mxu0
        %v1769 = vadd.f32 %v1640, %v1768
        %v1770 = vpop.f32.mrf.mxu0
        %v1771 = vadd.f32 %v1642, %v1770
        %1772 = vmatmul.bf16.gmra.mxu0 %v950
        %v1773 = vpop.f32.mrf.mxu0
        %v1774 = vadd.f32 %v1645, %v1773
        %v1775 = vpop.f32.mrf.mxu0
        %v1776 = vadd.f32 %v1647, %v1775
        %1777 = vmatmul.bf16.gmra.mxu0 %v956
        %v1778 = vpop.f32.mrf.mxu0
        %v1779 = vadd.f32 %v1650, %v1778
        %v1780 = vpop.f32.mrf.mxu0
        %v1781 = vadd.f32 %v1652, %v1780
        %1782 = vmatmul.bf16.gmra.mxu0 %v962
        %v1783 = vpop.f32.mrf.mxu0
        %v1784 = vadd.f32 %v1655, %v1783
        %v1785 = vpop.f32.mrf.mxu0
        %v1786 = vadd.f32 %v1657, %v1785
        %1787 = vmatmul.bf16.gmra.mxu0 %v968
        %v1788 = vpop.f32.mrf.mxu0
        %v1789 = vadd.f32 %v1660, %v1788
        %v1790 = vpop.f32.mrf.mxu0
        %v1791 = vadd.f32 %v1662, %v1790
        %1792 = vmatmul.bf16.gmra.mxu0 %v974
        %v1793 = vpop.f32.mrf.mxu0
        %v1794 = vadd.f32 %v1665, %v1793
        %v1795 = vpop.f32.mrf.mxu0
        %v1796 = vadd.f32 %v1667, %v1795
        %1797 = vmatmul.bf16.gmra.mxu0 %v980
        %v1798 = vpop.f32.mrf.mxu0
        %v1799 = vadd.f32 %v1670, %v1798
        %v1800 = vpop.f32.mrf.mxu0
        %v1801 = vadd.f32 %v1672, %v1800
        %1802 = vdwg.mxu0
        %1803 = vmatpush.bf16.msra.mxu0 %v1351
        %1804 = vmatpush.bf16.msra.mxu0 %v1350
        %1805 = vmatpush.bf16.msra.mxu0 %v1349
        %1806 = vmatpush.bf16.msra.mxu0 %v1348
        %1807 = vmatpush.bf16.msra.mxu0 %v1347
        %1808 = vmatpush.bf16.msra.mxu0 %v1346
        %1809 = vmatpush.bf16.msra.mxu0 %v1345
        %1810 = vmatpush.bf16.msra.mxu0 %v1344
        %1811 = vmatmul.bf16.gmra.mxu0 %v843
        %v1812 = vpop.f32.mrf.mxu0
        %v1813 = vadd.f32 %v1684, %v1812
        %v1814 = vpop.f32.mrf.mxu0
        %v1815 = vadd.f32 %v1686, %v1814
        %1816 = vmatmul.bf16.gmra.mxu0 %v849
        %v1817 = vpop.f32.mrf.mxu0
        %v1818 = vadd.f32 %v1689, %v1817
        %v1819 = vpop.f32.mrf.mxu0
        %v1820 = vadd.f32 %v1691, %v1819
        %1821 = vmatmul.bf16.gmra.mxu0 %v855
        %v1822 = vpop.f32.mrf.mxu0
        %v1823 = vadd.f32 %v1694, %v1822
        %v1824 = vpop.f32.mrf.mxu0
        %v1825 = vadd.f32 %v1696, %v1824
        %1826 = vmatmul.bf16.gmra.mxu0 %v861
        %v1827 = vpop.f32.mrf.mxu0
        %v1828 = vadd.f32 %v1699, %v1827
        %v1829 = vpop.f32.mrf.mxu0
        %v1830 = vadd.f32 %v1701, %v1829
        %1831 = vmatmul.bf16.gmra.mxu0 %v867
        %v1832 = vpop.f32.mrf.mxu0
        %v1833 = vadd.f32 %v1704, %v1832
        %v1834 = vpop.f32.mrf.mxu0
        %v1835 = vadd.f32 %v1706, %v1834
        %1836 = vmatmul.bf16.gmra.mxu0 %v873
        %v1837 = vpop.f32.mrf.mxu0
        %v1838 = vadd.f32 %v1709, %v1837
        %v1839 = vpop.f32.mrf.mxu0
        %v1840 = vadd.f32 %v1711, %v1839
        %1841 = vmatmul.bf16.gmra.mxu0 %v879
        %v1842 = vpop.f32.mrf.mxu0
        %v1843 = vadd.f32 %v1714, %v1842
        %v1844 = vpop.f32.mrf.mxu0
        %v1845 = vadd.f32 %v1716, %v1844
        %1846 = vmatmul.bf16.gmra.mxu0 %v885
        %v1847 = vpop.f32.mrf.mxu0
        %v1848 = vadd.f32 %v1719, %v1847
        %v1849 = vpop.f32.mrf.mxu0
        %v1850 = vadd.f32 %v1721, %v1849
        %1851 = vmatmul.bf16.gmra.mxu0 %v891
        %v1852 = vpop.f32.mrf.mxu0
        %v1853 = vadd.f32 %v1724, %v1852
        %v1854 = vpop.f32.mrf.mxu0
        %v1855 = vadd.f32 %v1726, %v1854
        %1856 = vmatmul.bf16.gmra.mxu0 %v897
        %v1857 = vpop.f32.mrf.mxu0
        %v1858 = vadd.f32 %v1729, %v1857
        %v1859 = vpop.f32.mrf.mxu0
        %v1860 = vadd.f32 %v1731, %v1859
        %1861 = vmatmul.bf16.gmra.mxu0 %v903
        %v1862 = vpop.f32.mrf.mxu0
        %v1863 = vadd.f32 %v1734, %v1862
        %v1864 = vpop.f32.mrf.mxu0
        %v1865 = vadd.f32 %v1736, %v1864
        %1866 = vmatmul.bf16.gmra.mxu0 %v909
        %v1867 = vpop.f32.mrf.mxu0
        %v1868 = vadd.f32 %v1739, %v1867
        %v1869 = vpop.f32.mrf.mxu0
        %v1870 = vadd.f32 %v1741, %v1869
        %1871 = vmatmul.bf16.gmra.mxu0 %v915
        %v1872 = vpop.f32.mrf.mxu0
        %v1873 = vadd.f32 %v1744, %v1872
        %v1874 = vpop.f32.mrf.mxu0
        %v1875 = vadd.f32 %v1746, %v1874
        %1876 = vmatmul.bf16.gmra.mxu0 %v921
        %v1877 = vpop.f32.mrf.mxu0
        %v1878 = vadd.f32 %v1749, %v1877
        %v1879 = vpop.f32.mrf.mxu0
        %v1880 = vadd.f32 %v1751, %v1879
        %1881 = vmatmul.bf16.gmra.mxu0 %v927
        %v1882 = vpop.f32.mrf.mxu0
        %v1883 = vadd.f32 %v1754, %v1882
        %v1884 = vpop.f32.mrf.mxu0
        %v1885 = vadd.f32 %v1756, %v1884
        %1886 = vmatmul.bf16.gmra.mxu0 %v933
        %v1887 = vpop.f32.mrf.mxu0
        %v1888 = vadd.f32 %v1759, %v1887
        %v1889 = vpop.f32.mrf.mxu0
        %v1890 = vadd.f32 %v1761, %v1889
        %1891 = vmatmul.bf16.gmra.mxu0 %v939
        %v1892 = vpop.f32.mrf.mxu0
        %v1893 = vadd.f32 %v1764, %v1892
        %v1894 = vpop.f32.mrf.mxu0
        %v1895 = vadd.f32 %v1766, %v1894
        %1896 = vmatmul.bf16.gmra.mxu0 %v945
        %v1897 = vpop.f32.mrf.mxu0
        %v1898 = vadd.f32 %v1769, %v1897
        %v1899 = vpop.f32.mrf.mxu0
        %v1900 = vadd.f32 %v1771, %v1899
        %1901 = vmatmul.bf16.gmra.mxu0 %v951
        %v1902 = vpop.f32.mrf.mxu0
        %v1903 = vadd.f32 %v1774, %v1902
        %v1904 = vpop.f32.mrf.mxu0
        %v1905 = vadd.f32 %v1776, %v1904
        %1906 = vmatmul.bf16.gmra.mxu0 %v957
        %v1907 = vpop.f32.mrf.mxu0
        %v1908 = vadd.f32 %v1779, %v1907
        %v1909 = vpop.f32.mrf.mxu0
        %v1910 = vadd.f32 %v1781, %v1909
        %1911 = vmatmul.bf16.gmra.mxu0 %v963
        %v1912 = vpop.f32.mrf.mxu0
        %v1913 = vadd.f32 %v1784, %v1912
        %v1914 = vpop.f32.mrf.mxu0
        %v1915 = vadd.f32 %v1786, %v1914
        %1916 = vmatmul.bf16.gmra.mxu0 %v969
        %v1917 = vpop.f32.mrf.mxu0
        %v1918 = vadd.f32 %v1789, %v1917
        %v1919 = vpop.f32.mrf.mxu0
        %v1920 = vadd.f32 %v1791, %v1919
        %1921 = vmatmul.bf16.gmra.mxu0 %v975
        %v1922 = vpop.f32.mrf.mxu0
        %v1923 = vadd.f32 %v1794, %v1922
        %v1924 = vpop.f32.mrf.mxu0
        %v1925 = vadd.f32 %v1796, %v1924
        %1926 = vmatmul.bf16.gmra.mxu0 %v981
        %v1927 = vpop.f32.mrf.mxu0
        %v1928 = vadd.f32 %v1799, %v1927
        %v1929 = vpop.f32.mrf.mxu0
        %v1930 = vadd.f32 %v1801, %v1929
        %1931 = vdwg.mxu0
        %1932 = vmatpush.bf16.msra.mxu0 %v1359
        %1933 = vmatpush.bf16.msra.mxu0 %v1358
        %1934 = vmatpush.bf16.msra.mxu0 %v1357
        %1935 = vmatpush.bf16.msra.mxu0 %v1356
        %1936 = vmatpush.bf16.msra.mxu0 %v1355
        %1937 = vmatpush.bf16.msra.mxu0 %v1354
        %1938 = vmatpush.bf16.msra.mxu0 %v1353
        %1939 = vmatpush.bf16.msra.mxu0 %v1352
        %1940 = vmatmul.bf16.gmra.mxu0 %v844
        %v1941 = vpop.f32.mrf.mxu0
        %v1942 = vadd.f32 %v1813, %v1941
        %v1943 = vpop.f32.mrf.mxu0
        %v1944 = vadd.f32 %v1815, %v1943
        %1945 = vmatmul.bf16.gmra.mxu0 %v850
        %v1946 = vpop.f32.mrf.mxu0
        %v1947 = vadd.f32 %v1818, %v1946
        %v1948 = vpop.f32.mrf.mxu0
        %v1949 = vadd.f32 %v1820, %v1948
        %1950 = vmatmul.bf16.gmra.mxu0 %v856
        %v1951 = vpop.f32.mrf.mxu0
        %v1952 = vadd.f32 %v1823, %v1951
        %v1953 = vpop.f32.mrf.mxu0
        %v1954 = vadd.f32 %v1825, %v1953
        %1955 = vmatmul.bf16.gmra.mxu0 %v862
        %v1956 = vpop.f32.mrf.mxu0
        %v1957 = vadd.f32 %v1828, %v1956
        %v1958 = vpop.f32.mrf.mxu0
        %v1959 = vadd.f32 %v1830, %v1958
        %1960 = vmatmul.bf16.gmra.mxu0 %v868
        %v1961 = vpop.f32.mrf.mxu0
        %v1962 = vadd.f32 %v1833, %v1961
        %v1963 = vpop.f32.mrf.mxu0
        %v1964 = vadd.f32 %v1835, %v1963
        %1965 = vmatmul.bf16.gmra.mxu0 %v874
        %v1966 = vpop.f32.mrf.mxu0
        %v1967 = vadd.f32 %v1838, %v1966
        %v1968 = vpop.f32.mrf.mxu0
        %v1969 = vadd.f32 %v1840, %v1968
        %1970 = vmatmul.bf16.gmra.mxu0 %v880
        %v1971 = vpop.f32.mrf.mxu0
        %v1972 = vadd.f32 %v1843, %v1971
        %v1973 = vpop.f32.mrf.mxu0
        %v1974 = vadd.f32 %v1845, %v1973
        %1975 = vmatmul.bf16.gmra.mxu0 %v886
        %v1976 = vpop.f32.mrf.mxu0
        %v1977 = vadd.f32 %v1848, %v1976
        %v1978 = vpop.f32.mrf.mxu0
        %v1979 = vadd.f32 %v1850, %v1978
        %1980 = vmatmul.bf16.gmra.mxu0 %v892
        %v1981 = vpop.f32.mrf.mxu0
        %v1982 = vadd.f32 %v1853, %v1981
        %v1983 = vpop.f32.mrf.mxu0
        %v1984 = vadd.f32 %v1855, %v1983
        %1985 = vmatmul.bf16.gmra.mxu0 %v898
        %v1986 = vpop.f32.mrf.mxu0
        %v1987 = vadd.f32 %v1858, %v1986
        %v1988 = vpop.f32.mrf.mxu0
        %v1989 = vadd.f32 %v1860, %v1988
        %1990 = vmatmul.bf16.gmra.mxu0 %v904
        %v1991 = vpop.f32.mrf.mxu0
        %v1992 = vadd.f32 %v1863, %v1991
        %v1993 = vpop.f32.mrf.mxu0
        %v1994 = vadd.f32 %v1865, %v1993
        %1995 = vmatmul.bf16.gmra.mxu0 %v910
        %v1996 = vpop.f32.mrf.mxu0
        %v1997 = vadd.f32 %v1868, %v1996
        %v1998 = vpop.f32.mrf.mxu0
        %v1999 = vadd.f32 %v1870, %v1998
        %2000 = vmatmul.bf16.gmra.mxu0 %v916
        %v2001 = vpop.f32.mrf.mxu0
        %v2002 = vadd.f32 %v1873, %v2001
        %v2003 = vpop.f32.mrf.mxu0
        %v2004 = vadd.f32 %v1875, %v2003
        %2005 = vmatmul.bf16.gmra.mxu0 %v922
        %v2006 = vpop.f32.mrf.mxu0
        %v2007 = vadd.f32 %v1878, %v2006
        %v2008 = vpop.f32.mrf.mxu0
        %v2009 = vadd.f32 %v1880, %v2008
        %2010 = vmatmul.bf16.gmra.mxu0 %v928
        %v2011 = vpop.f32.mrf.mxu0
        %v2012 = vadd.f32 %v1883, %v2011
        %v2013 = vpop.f32.mrf.mxu0
        %v2014 = vadd.f32 %v1885, %v2013
        %2015 = vmatmul.bf16.gmra.mxu0 %v934
        %v2016 = vpop.f32.mrf.mxu0
        %v2017 = vadd.f32 %v1888, %v2016
        %v2018 = vpop.f32.mrf.mxu0
        %v2019 = vadd.f32 %v1890, %v2018
        %2020 = vmatmul.bf16.gmra.mxu0 %v940
        %v2021 = vpop.f32.mrf.mxu0
        %v2022 = vadd.f32 %v1893, %v2021
        %v2023 = vpop.f32.mrf.mxu0
        %v2024 = vadd.f32 %v1895, %v2023
        %2025 = vmatmul.bf16.gmra.mxu0 %v946
        %v2026 = vpop.f32.mrf.mxu0
        %v2027 = vadd.f32 %v1898, %v2026
        %v2028 = vpop.f32.mrf.mxu0
        %v2029 = vadd.f32 %v1900, %v2028
        %2030 = vmatmul.bf16.gmra.mxu0 %v952
        %v2031 = vpop.f32.mrf.mxu0
        %v2032 = vadd.f32 %v1903, %v2031
        %v2033 = vpop.f32.mrf.mxu0
        %v2034 = vadd.f32 %v1905, %v2033
        %2035 = vmatmul.bf16.gmra.mxu0 %v958
        %v2036 = vpop.f32.mrf.mxu0
        %v2037 = vadd.f32 %v1908, %v2036
        %v2038 = vpop.f32.mrf.mxu0
        %v2039 = vadd.f32 %v1910, %v2038
        %2040 = vmatmul.bf16.gmra.mxu0 %v964
        %v2041 = vpop.f32.mrf.mxu0
        %v2042 = vadd.f32 %v1913, %v2041
        %v2043 = vpop.f32.mrf.mxu0
        %v2044 = vadd.f32 %v1915, %v2043
        %2045 = vmatmul.bf16.gmra.mxu0 %v970
        %v2046 = vpop.f32.mrf.mxu0
        %v2047 = vadd.f32 %v1918, %v2046
        %v2048 = vpop.f32.mrf.mxu0
        %v2049 = vadd.f32 %v1920, %v2048
        %2050 = vmatmul.bf16.gmra.mxu0 %v976
        %v2051 = vpop.f32.mrf.mxu0
        %v2052 = vadd.f32 %v1923, %v2051
        %v2053 = vpop.f32.mrf.mxu0
        %v2054 = vadd.f32 %v1925, %v2053
        %2055 = vmatmul.bf16.gmra.mxu0 %v982
        %v2056 = vpop.f32.mrf.mxu0
        %v2057 = vadd.f32 %v1928, %v2056
        %v2058 = vpop.f32.mrf.mxu0
        %v2059 = vadd.f32 %v1930, %v2058
        %2060 = vdwg.mxu0
        %2061 = vmatpush.bf16.msra.mxu0 %v1367
        %2062 = vmatpush.bf16.msra.mxu0 %v1366
        %2063 = vmatpush.bf16.msra.mxu0 %v1365
        %2064 = vmatpush.bf16.msra.mxu0 %v1364
        %2065 = vmatpush.bf16.msra.mxu0 %v1363
        %2066 = vmatpush.bf16.msra.mxu0 %v1362
        %2067 = vmatpush.bf16.msra.mxu0 %v1361
        %2068 = vmatpush.bf16.msra.mxu0 %v1360
        %2069 = vmatmul.bf16.gmra.mxu0 %v845
        %v2070 = vpop.f32.mrf.mxu0
        %v2071 = vadd.f32 %v1942, %v2070
        %v2072 = vpop.f32.mrf.mxu0
        %v2073 = vadd.f32 %v1944, %v2072
        %2074 = vmatmul.bf16.gmra.mxu0 %v851
        %v2075 = vpop.f32.mrf.mxu0
        %v2076 = vadd.f32 %v1947, %v2075
        %v2077 = vpop.f32.mrf.mxu0
        %v2078 = vadd.f32 %v1949, %v2077
        %2079 = vmatmul.bf16.gmra.mxu0 %v857
        %v2080 = vpop.f32.mrf.mxu0
        %v2081 = vadd.f32 %v1952, %v2080
        %v2082 = vpop.f32.mrf.mxu0
        %v2083 = vadd.f32 %v1954, %v2082
        %2084 = vmatmul.bf16.gmra.mxu0 %v863
        %v2085 = vpop.f32.mrf.mxu0
        %v2086 = vadd.f32 %v1957, %v2085
        %v2087 = vpop.f32.mrf.mxu0
        %v2088 = vadd.f32 %v1959, %v2087
        %2089 = vmatmul.bf16.gmra.mxu0 %v869
        %v2090 = vpop.f32.mrf.mxu0
        %v2091 = vadd.f32 %v1962, %v2090
        %v2092 = vpop.f32.mrf.mxu0
        %v2093 = vadd.f32 %v1964, %v2092
        %2094 = vmatmul.bf16.gmra.mxu0 %v875
        %v2095 = vpop.f32.mrf.mxu0
        %v2096 = vadd.f32 %v1967, %v2095
        %v2097 = vpop.f32.mrf.mxu0
        %v2098 = vadd.f32 %v1969, %v2097
        %2099 = vmatmul.bf16.gmra.mxu0 %v881
        %v2100 = vpop.f32.mrf.mxu0
        %v2101 = vadd.f32 %v1972, %v2100
        %v2102 = vpop.f32.mrf.mxu0
        %v2103 = vadd.f32 %v1974, %v2102
        %2104 = vmatmul.bf16.gmra.mxu0 %v887
        %v2105 = vpop.f32.mrf.mxu0
        %v2106 = vadd.f32 %v1977, %v2105
        %v2107 = vpop.f32.mrf.mxu0
        %v2108 = vadd.f32 %v1979, %v2107
        %2109 = vmatmul.bf16.gmra.mxu0 %v893
        %v2110 = vpop.f32.mrf.mxu0
        %v2111 = vadd.f32 %v1982, %v2110
        %v2112 = vpop.f32.mrf.mxu0
        %v2113 = vadd.f32 %v1984, %v2112
        %2114 = vmatmul.bf16.gmra.mxu0 %v899
        %v2115 = vpop.f32.mrf.mxu0
        %v2116 = vadd.f32 %v1987, %v2115
        %v2117 = vpop.f32.mrf.mxu0
        %v2118 = vadd.f32 %v1989, %v2117
        %2119 = vmatmul.bf16.gmra.mxu0 %v905
        %v2120 = vpop.f32.mrf.mxu0
        %v2121 = vadd.f32 %v1992, %v2120
        %v2122 = vpop.f32.mrf.mxu0
        %v2123 = vadd.f32 %v1994, %v2122
        %2124 = vmatmul.bf16.gmra.mxu0 %v911
        %v2125 = vpop.f32.mrf.mxu0
        %v2126 = vadd.f32 %v1997, %v2125
        %v2127 = vpop.f32.mrf.mxu0
        %v2128 = vadd.f32 %v1999, %v2127
        %2129 = vmatmul.bf16.gmra.mxu0 %v917
        %v2130 = vpop.f32.mrf.mxu0
        %v2131 = vadd.f32 %v2002, %v2130
        %v2132 = vpop.f32.mrf.mxu0
        %v2133 = vadd.f32 %v2004, %v2132
        %2134 = vmatmul.bf16.gmra.mxu0 %v923
        %v2135 = vpop.f32.mrf.mxu0
        %v2136 = vadd.f32 %v2007, %v2135
        %v2137 = vpop.f32.mrf.mxu0
        %v2138 = vadd.f32 %v2009, %v2137
        %2139 = vmatmul.bf16.gmra.mxu0 %v929
        %v2140 = vpop.f32.mrf.mxu0
        %v2141 = vadd.f32 %v2012, %v2140
        %v2142 = vpop.f32.mrf.mxu0
        %v2143 = vadd.f32 %v2014, %v2142
        %2144 = vmatmul.bf16.gmra.mxu0 %v935
        %v2145 = vpop.f32.mrf.mxu0
        %v2146 = vadd.f32 %v2017, %v2145
        %v2147 = vpop.f32.mrf.mxu0
        %v2148 = vadd.f32 %v2019, %v2147
        %2149 = vmatmul.bf16.gmra.mxu0 %v941
        %v2150 = vpop.f32.mrf.mxu0
        %v2151 = vadd.f32 %v2022, %v2150
        %v2152 = vpop.f32.mrf.mxu0
        %v2153 = vadd.f32 %v2024, %v2152
        %2154 = vmatmul.bf16.gmra.mxu0 %v947
        %v2155 = vpop.f32.mrf.mxu0
        %v2156 = vadd.f32 %v2027, %v2155
        %v2157 = vpop.f32.mrf.mxu0
        %v2158 = vadd.f32 %v2029, %v2157
        %2159 = vmatmul.bf16.gmra.mxu0 %v953
        %v2160 = vpop.f32.mrf.mxu0
        %v2161 = vadd.f32 %v2032, %v2160
        %v2162 = vpop.f32.mrf.mxu0
        %v2163 = vadd.f32 %v2034, %v2162
        %2164 = vmatmul.bf16.gmra.mxu0 %v959
        %v2165 = vpop.f32.mrf.mxu0
        %v2166 = vadd.f32 %v2037, %v2165
        %v2167 = vpop.f32.mrf.mxu0
        %v2168 = vadd.f32 %v2039, %v2167
        %2169 = vmatmul.bf16.gmra.mxu0 %v965
        %v2170 = vpop.f32.mrf.mxu0
        %v2171 = vadd.f32 %v2042, %v2170
        %v2172 = vpop.f32.mrf.mxu0
        %v2173 = vadd.f32 %v2044, %v2172
        %2174 = vmatmul.bf16.gmra.mxu0 %v971
        %v2175 = vpop.f32.mrf.mxu0
        %v2176 = vadd.f32 %v2047, %v2175
        %v2177 = vpop.f32.mrf.mxu0
        %v2178 = vadd.f32 %v2049, %v2177
        %2179 = vmatmul.bf16.gmra.mxu0 %v977
        %v2180 = vpop.f32.mrf.mxu0
        %v2181 = vadd.f32 %v2052, %v2180
        %v2182 = vpop.f32.mrf.mxu0
        %v2183 = vadd.f32 %v2054, %v2182
        %2184 = vmatmul.bf16.gmra.mxu0 %v983
        %v2185 = vpop.f32.mrf.mxu0
        %v2186 = vadd.f32 %v2057, %v2185
        %v2187 = vpop.f32.mrf.mxu0
        %v2188 = vadd.f32 %v2059, %v2187
        %2189 = vdwg.mxu0
        %v2190 = vld [vmem:[#allocation2] sm:$0xff]
        %v2191 = vsub.f32 %v2071, %v2111
        %v2192 = vsub.f32 %v2073, %v2113
        %v2193 = vsub.f32 %v2076, %v2116
        %v2194 = vsub.f32 %v2078, %v2118
        %v2195 = vsub.f32 %v2081, %v2121
        %v2196 = vsub.f32 %v2083, %v2123
        %v2197 = vsub.f32 %v2086, %v2126
        %v2198 = vsub.f32 %v2088, %v2128
        %v2199 = vsub.f32 %v2091, %v2131
        %v2200 = vsub.f32 %v2093, %v2133
        %v2201 = vsub.f32 %v2096, %v2136
        %v2202 = vsub.f32 %v2098, %v2138
        %v2203 = vsub.f32 %v2101, %v2141
        %v2204 = vsub.f32 %v2103, %v2143
        %v2205 = vsub.f32 %v2106, %v2146
        %v2206 = vsub.f32 %v2108, %v2148
        %v2207 = vand.u32 2147483647, %v2191
        %v2208 = vand.u32 2147483647, %v2192
        %v2209 = vand.u32 2147483647, %v2193
        %v2210 = vand.u32 2147483647, %v2194
        %v2211 = vand.u32 2147483647, %v2195
        %v2212 = vand.u32 2147483647, %v2196
        %v2213 = vand.u32 2147483647, %v2197
        %v2214 = vand.u32 2147483647, %v2198
        %v2215 = vand.u32 2147483647, %v2199
        %v2216 = vand.u32 2147483647, %v2200
        %v2217 = vand.u32 2147483647, %v2201
        %v2218 = vand.u32 2147483647, %v2202
        %v2219 = vand.u32 2147483647, %v2203
        %v2220 = vand.u32 2147483647, %v2204
        %v2221 = vand.u32 2147483647, %v2205
        %v2222 = vand.u32 2147483647, %v2206
        %v2223 = vadd.f32 %v2207, %v2208
        %v2224 = vadd.f32 %v2223, %v2209
        %v2225 = vadd.f32 %v2224, %v2210
        %v2226 = vadd.f32 %v2225, %v2211
        %v2227 = vadd.f32 %v2226, %v2212
        %v2228 = vadd.f32 %v2227, %v2213
        %v2229 = vadd.f32 %v2228, %v2214
        %v2230 = vadd.f32 %v2229, %v2215
        %v2231 = vadd.f32 %v2230, %v2216
        %v2232 = vadd.f32 %v2231, %v2217
        %v2233 = vadd.f32 %v2232, %v2218
        %v2234 = vadd.f32 %v2233, %v2219
        %v2235 = vadd.f32 %v2234, %v2220
        %v2236 = vadd.f32 %v2235, %v2221
        %v2237 = vadd.f32 %v2236, %v2222
        %v2238 = vadd.f32 %v2190, %v2237
        %2239 = vst [vmem:[#allocation2] sm:$0xff] %v2238
        %v2240 = vld [vmem:[#allocation3] sm:$0xff]
        %v2241 = vsub.f32 %v2071, %v2151
        %v2242 = vsub.f32 %v2073, %v2153
        %v2243 = vsub.f32 %v2076, %v2156
        %v2244 = vsub.f32 %v2078, %v2158
        %v2245 = vsub.f32 %v2081, %v2161
        %v2246 = vsub.f32 %v2083, %v2163
        %v2247 = vsub.f32 %v2086, %v2166
        %v2248 = vsub.f32 %v2088, %v2168
        %v2249 = vsub.f32 %v2091, %v2171
        %v2250 = vsub.f32 %v2093, %v2173
        %v2251 = vsub.f32 %v2096, %v2176
        %v2252 = vsub.f32 %v2098, %v2178
        %v2253 = vsub.f32 %v2101, %v2181
        %v2254 = vsub.f32 %v2103, %v2183
        %v2255 = vsub.f32 %v2106, %v2186
        %v2256 = vsub.f32 %v2108, %v2188
        %v2257 = vand.u32 2147483647, %v2241
        %v2258 = vand.u32 2147483647, %v2242
        %v2259 = vand.u32 2147483647, %v2243
        %v2260 = vand.u32 2147483647, %v2244
        %v2261 = vand.u32 2147483647, %v2245
        %v2262 = vand.u32 2147483647, %v2246
        %v2263 = vand.u32 2147483647, %v2247
        %v2264 = vand.u32 2147483647, %v2248
        %v2265 = vand.u32 2147483647, %v2249
        %v2266 = vand.u32 2147483647, %v2250
        %v2267 = vand.u32 2147483647, %v2251
        %v2268 = vand.u32 2147483647, %v2252
        %v2269 = vand.u32 2147483647, %v2253
        %v2270 = vand.u32 2147483647, %v2254
        %v2271 = vand.u32 2147483647, %v2255
        %v2272 = vand.u32 2147483647, %v2256
        %v2273 = vadd.f32 %v2257, %v2258
        %v2274 = vadd.f32 %v2273, %v2259
        %v2275 = vadd.f32 %v2274, %v2260
        %v2276 = vadd.f32 %v2275, %v2261
        %v2277 = vadd.f32 %v2276, %v2262
        %v2278 = vadd.f32 %v2277, %v2263
        %v2279 = vadd.f32 %v2278, %v2264
        %v2280 = vadd.f32 %v2279, %v2265
        %v2281 = vadd.f32 %v2280, %v2266
        %v2282 = vadd.f32 %v2281, %v2267
        %v2283 = vadd.f32 %v2282, %v2268
        %v2284 = vadd.f32 %v2283, %v2269
        %v2285 = vadd.f32 %v2284, %v2270
        %v2286 = vadd.f32 %v2285, %v2271
        %v2287 = vadd.f32 %v2286, %v2272
        %v2288 = vadd.f32 %v2240, %v2287
        %2289 = vst [vmem:[#allocation3] sm:$0xff] %v2288
        %v2290 = vadd.f32 %v2071, %v2073
        %v2291 = vrot.slane %v2290, 4
        %v2292 = vadd.f32 %v2290, %v2291
        %v2293 = vrot.slane %v2292, 2
        %v2294 = vadd.f32 %v2292, %v2293
        %v2295 = vrot.slane %v2294, 1
        %v2296 = vadd.f32 %v2294, %v2295
        %v2297 = vadd.f32 %v2076, %v2078
        %v2298 = vrot.slane %v2297, 4
        %v2299 = vadd.f32 %v2297, %v2298
        %v2300 = vrot.slane %v2299, 2
        %v2301 = vadd.f32 %v2299, %v2300
        %v2302 = vrot.slane %v2301, 1
        %v2303 = vadd.f32 %v2301, %v2302
        %v2304 = vadd.f32 %v2081, %v2083
        %v2305 = vrot.slane %v2304, 4
        %v2306 = vadd.f32 %v2304, %v2305
        %v2307 = vrot.slane %v2306, 2
        %v2308 = vadd.f32 %v2306, %v2307
        %v2309 = vrot.slane %v2308, 1
        %v2310 = vadd.f32 %v2308, %v2309
        %v2311 = vadd.f32 %v2086, %v2088
        %v2312 = vrot.slane %v2311, 4
        %v2313 = vadd.f32 %v2311, %v2312
        %v2314 = vrot.slane %v2313, 2
        %v2315 = vadd.f32 %v2313, %v2314
        %v2316 = vrot.slane %v2315, 1
        %v2317 = vadd.f32 %v2315, %v2316
        %v2318 = vadd.f32 %v2091, %v2093
        %v2319 = vrot.slane %v2318, 4
        %v2320 = vadd.f32 %v2318, %v2319
        %v2321 = vrot.slane %v2320, 2
        %v2322 = vadd.f32 %v2320, %v2321
        %v2323 = vrot.slane %v2322, 1
        %v2324 = vadd.f32 %v2322, %v2323
        %v2325 = vadd.f32 %v2096, %v2098
        %v2326 = vrot.slane %v2325, 4
        %v2327 = vadd.f32 %v2325, %v2326
        %v2328 = vrot.slane %v2327, 2
        %v2329 = vadd.f32 %v2327, %v2328
        %v2330 = vrot.slane %v2329, 1
        %v2331 = vadd.f32 %v2329, %v2330
        %v2332 = vadd.f32 %v2101, %v2103
        %v2333 = vrot.slane %v2332, 4
        %v2334 = vadd.f32 %v2332, %v2333
        %v2335 = vrot.slane %v2334, 2
        %v2336 = vadd.f32 %v2334, %v2335
        %v2337 = vrot.slane %v2336, 1
        %v2338 = vadd.f32 %v2336, %v2337
        %v2339 = vadd.f32 %v2106, %v2108
        %v2340 = vrot.slane %v2339, 4
        %v2341 = vadd.f32 %v2339, %v2340
        %v2342 = vrot.slane %v2341, 2
        %v2343 = vadd.f32 %v2341, %v2342
        %v2344 = vrot.slane %v2343, 1
        %v2345 = vadd.f32 %v2343, %v2344
        %v2346 = vadd.f32 %v2111, %v2113
        %v2347 = vrot.slane %v2346, 4
        %v2348 = vadd.f32 %v2346, %v2347
        %v2349 = vrot.slane %v2348, 2
        %v2350 = vadd.f32 %v2348, %v2349
        %v2351 = vrot.slane %v2350, 1
        %v2352 = vadd.f32 %v2350, %v2351
        %v2353 = vadd.f32 %v2116, %v2118
        %v2354 = vrot.slane %v2353, 4
        %v2355 = vadd.f32 %v2353, %v2354
        %v2356 = vrot.slane %v2355, 2
        %v2357 = vadd.f32 %v2355, %v2356
        %v2358 = vrot.slane %v2357, 1
        %v2359 = vadd.f32 %v2357, %v2358
        %v2360 = vadd.f32 %v2121, %v2123
        %v2361 = vrot.slane %v2360, 4
        %v2362 = vadd.f32 %v2360, %v2361
        %v2363 = vrot.slane %v2362, 2
        %v2364 = vadd.f32 %v2362, %v2363
        %v2365 = vrot.slane %v2364, 1
        %v2366 = vadd.f32 %v2364, %v2365
        %v2367 = vadd.f32 %v2126, %v2128
        %v2368 = vrot.slane %v2367, 4
        %v2369 = vadd.f32 %v2367, %v2368
        %v2370 = vrot.slane %v2369, 2
        %v2371 = vadd.f32 %v2369, %v2370
        %v2372 = vrot.slane %v2371, 1
        %v2373 = vadd.f32 %v2371, %v2372
        %v2374 = vadd.f32 %v2131, %v2133
        %v2375 = vrot.slane %v2374, 4
        %v2376 = vadd.f32 %v2374, %v2375
        %v2377 = vrot.slane %v2376, 2
        %v2378 = vadd.f32 %v2376, %v2377
        %v2379 = vrot.slane %v2378, 1
        %v2380 = vadd.f32 %v2378, %v2379
        %v2381 = vadd.f32 %v2136, %v2138
        %v2382 = vrot.slane %v2381, 4
        %v2383 = vadd.f32 %v2381, %v2382
        %v2384 = vrot.slane %v2383, 2
        %v2385 = vadd.f32 %v2383, %v2384
        %v2386 = vrot.slane %v2385, 1
        %v2387 = vadd.f32 %v2385, %v2386
        %v2388 = vadd.f32 %v2141, %v2143
        %v2389 = vrot.slane %v2388, 4
        %v2390 = vadd.f32 %v2388, %v2389
        %v2391 = vrot.slane %v2390, 2
        %v2392 = vadd.f32 %v2390, %v2391
        %v2393 = vrot.slane %v2392, 1
        %v2394 = vadd.f32 %v2392, %v2393
        %v2395 = vadd.f32 %v2146, %v2148
        %v2396 = vrot.slane %v2395, 4
        %v2397 = vadd.f32 %v2395, %v2396
        %v2398 = vrot.slane %v2397, 2
        %v2399 = vadd.f32 %v2397, %v2398
        %v2400 = vrot.slane %v2399, 1
        %v2401 = vadd.f32 %v2399, %v2400
        %v2402 = vadd.f32 %v2151, %v2153
        %v2403 = vrot.slane %v2402, 4
        %v2404 = vadd.f32 %v2402, %v2403
        %v2405 = vrot.slane %v2404, 2
        %v2406 = vadd.f32 %v2404, %v2405
        %v2407 = vrot.slane %v2406, 1
        %v2408 = vadd.f32 %v2406, %v2407
        %v2409 = vadd.f32 %v2156, %v2158
        %v2410 = vrot.slane %v2409, 4
        %v2411 = vadd.f32 %v2409, %v2410
        %v2412 = vrot.slane %v2411, 2
        %v2413 = vadd.f32 %v2411, %v2412
        %v2414 = vrot.slane %v2413, 1
        %v2415 = vadd.f32 %v2413, %v2414
        %v2416 = vadd.f32 %v2161, %v2163
        %v2417 = vrot.slane %v2416, 4
        %v2418 = vadd.f32 %v2416, %v2417
        %v2419 = vrot.slane %v2418, 2
        %v2420 = vadd.f32 %v2418, %v2419
        %v2421 = vrot.slane %v2420, 1
        %v2422 = vadd.f32 %v2420, %v2421
        %v2423 = vadd.f32 %v2166, %v2168
        %v2424 = vrot.slane %v2423, 4
        %v2425 = vadd.f32 %v2423, %v2424
        %v2426 = vrot.slane %v2425, 2
        %v2427 = vadd.f32 %v2425, %v2426
        %v2428 = vrot.slane %v2427, 1
        %v2429 = vadd.f32 %v2427, %v2428
        %v2430 = vadd.f32 %v2171, %v2173
        %v2431 = vrot.slane %v2430, 4
        %v2432 = vadd.f32 %v2430, %v2431
        %v2433 = vrot.slane %v2432, 2
        %v2434 = vadd.f32 %v2432, %v2433
        %v2435 = vrot.slane %v2434, 1
        %v2436 = vadd.f32 %v2434, %v2435
        %v2437 = vadd.f32 %v2176, %v2178
        %v2438 = vrot.slane %v2437, 4
        %v2439 = vadd.f32 %v2437, %v2438
        %v2440 = vrot.slane %v2439, 2
        %v2441 = vadd.f32 %v2439, %v2440
        %v2442 = vrot.slane %v2441, 1
        %v2443 = vadd.f32 %v2441, %v2442
        %v2444 = vadd.f32 %v2181, %v2183
        %v2445 = vrot.slane %v2444, 4
        %v2446 = vadd.f32 %v2444, %v2445
        %v2447 = vrot.slane %v2446, 2
        %v2448 = vadd.f32 %v2446, %v2447
        %v2449 = vrot.slane %v2448, 1
        %v2450 = vadd.f32 %v2448, %v2449
        %v2451 = vadd.f32 %v2186, %v2188
        %v2452 = vrot.slane %v2451, 4
        %v2453 = vadd.f32 %v2451, %v2452
        %v2454 = vrot.slane %v2453, 2
        %v2455 = vadd.f32 %v2453, %v2454
        %v2456 = vrot.slane %v2455, 1
        %v2457 = vadd.f32 %v2455, %v2456
        %v2458 = vmul.f32 %v2296, 0.0625
        %v2459 = vmul.f32 %v2303, 0.0625
        %v2460 = vmul.f32 %v2310, 0.0625
        %v2461 = vmul.f32 %v2317, 0.0625
        %v2462 = vmul.f32 %v2324, 0.0625
        %v2463 = vmul.f32 %v2331, 0.0625
        %v2464 = vmul.f32 %v2338, 0.0625
        %v2465 = vmul.f32 %v2345, 0.0625
        %v2466 = vmul.f32 %v2352, 0.0625
        %v2467 = vmul.f32 %v2359, 0.0625
        %v2468 = vmul.f32 %v2366, 0.0625
        %v2469 = vmul.f32 %v2373, 0.0625
        %v2470 = vmul.f32 %v2380, 0.0625
        %v2471 = vmul.f32 %v2387, 0.0625
        %v2472 = vmul.f32 %v2394, 0.0625
        %v2473 = vmul.f32 %v2401, 0.0625
        %v2474 = vmul.f32 %v2408, 0.0625
        %v2475 = vmul.f32 %v2415, 0.0625
        %v2476 = vmul.f32 %v2422, 0.0625
        %v2477 = vmul.f32 %v2429, 0.0625
        %v2478 = vmul.f32 %v2436, 0.0625
        %v2479 = vmul.f32 %v2443, 0.0625
        %v2480 = vmul.f32 %v2450, 0.0625
        %v2481 = vmul.f32 %v2457, 0.0625
        %s2482 = smul.u32 %s15, 8
        %vm2491 = vcmask 1041409
        %v2492 = vsel %vm2491, %v2459, %v2458
        %vm2493 = vcmask 1042434
        %v2494 = vsel %vm2493, %v2460, %v2492
        %vm2495 = vcmask 1043459
        %v2496 = vsel %vm2495, %v2461, %v2494
        %vm2497 = vcmask 1044484
        %v2498 = vsel %vm2497, %v2462, %v2496
        %vm2499 = vcmask 1045509
        %v2500 = vsel %vm2499, %v2463, %v2498
        %vm2501 = vcmask 1046534
        %v2502 = vsel %vm2501, %v2464, %v2500
        %vm2503 = vcmask 1047559
        %v2504 = vsel %vm2503, %v2465, %v2502
        %s2506 = scalar_lea.vmem [#allocation4], %s2482
        %2507 = vst [vmem:[%s2506] sm:$0xff] %v2504
        %s2508 = sadd.s32 %s2482, 16
        %v2517 = vsel %vm2491, %v2467, %v2466
        %v2518 = vsel %vm2493, %v2468, %v2517
        %v2519 = vsel %vm2495, %v2469, %v2518
        %v2520 = vsel %vm2497, %v2470, %v2519
        %v2521 = vsel %vm2499, %v2471, %v2520
        %v2522 = vsel %vm2501, %v2472, %v2521
        %v2523 = vsel %vm2503, %v2473, %v2522
        %s2525 = scalar_lea.vmem [#allocation4], %s2508
        %2526 = vst [vmem:[%s2525] sm:$0xff] %v2523
        %s2527 = sadd.s32 %s2482, 32
        %v2536 = vsel %vm2491, %v2475, %v2474
        %v2537 = vsel %vm2493, %v2476, %v2536
        %v2538 = vsel %vm2495, %v2477, %v2537
        %v2539 = vsel %vm2497, %v2478, %v2538
        %v2540 = vsel %vm2499, %v2479, %v2539
        %v2541 = vsel %vm2501, %v2480, %v2540
        %v2542 = vsel %vm2503, %v2481, %v2541
        %s2544 = scalar_lea.vmem [#allocation4], %s2527
        %2545 = vst [vmem:[%s2544] sm:$0xff] %v2542
        %p2546 = scmp.eq.s32.totalorder %s15, 1
        // Predicated region
        $region37: #{ram_contrast_loss.1} parent=31 // pred_check
          %p2547 = pneg %p2546
        $region38: #{ram_contrast_loss.1} parent=31 // pred_check_branch
          %2549 = sbr.rel (%p2547) target = $region40
        $region39: #{ram_contrast_loss.1} parent=31 // pred_region
          %v2550 = vld [vmem:[#allocation4] sm:$0xff]
          %v2551 = vld [vmem:[#allocation4 + $0x8] sm:$0xff]
          %v2552 = vld [vmem:[#allocation4 + $0x10] sm:$0xff]
          %v2553 = vld [vmem:[#allocation4 + $0x18] sm:$0xff]
          %v2554 = vld [vmem:[#allocation4 + $0x20] sm:$0xff]
          %v2555 = vld [vmem:[#allocation4 + $0x28] sm:$0xff]
          %v2556 = vpack.c.bf16 %v2551, %v2550
          %v2557 = vpack.c.bf16 %v2553, %v2552
          %v2558 = vpack.c.bf16 %v2555, %v2554
          %v2559 = vld [vmem:[%s2] sm:$0xf]
          %v2560 = vld [vmem:[%s2 + $0x4] sm:$0xf]
          %v2561 = vld [vmem:[%s2 + $0x8] sm:$0xf]
          %v2562 = vld [vmem:[%s2 + $0xc] sm:$0xf]
          %v2563 = vld [vmem:[%s2 + $0x10] sm:$0xf]
          %v2564 = vld [vmem:[%s2 + $0x14] sm:$0xf]
          %v2565 = vld [vmem:[%s2 + $0x18] sm:$0xf]
          %v2566 = vld [vmem:[%s2 + $0x1c] sm:$0xf]
          %v2567 = vld [vmem:[%s2 + $0x20] sm:$0xf]
          %v2568 = vld [vmem:[%s2 + $0x24] sm:$0xf]
          %v2569 = vld [vmem:[%s2 + $0x28] sm:$0xf]
          %v2570 = vld [vmem:[%s2 + $0x2c] sm:$0xf]
          %v2571 = vld [vmem:[%s2 + $0x30] sm:$0xf]
          %v2572 = vld [vmem:[%s2 + $0x34] sm:$0xf]
          %v2573 = vld [vmem:[%s2 + $0x38] sm:$0xf]
          %v2574 = vld [vmem:[%s2 + $0x3c] sm:$0xf]
          %v2591 = vunpack.c.l.b16 %v2559
          %v2592 = vunpack.c.l.b16 %v2560
          %v2593 = vunpack.c.l.b16 %v2561
          %v2594 = vunpack.c.l.b16 %v2562
          %v2595 = vunpack.c.l.b16 %v2563
          %v2596 = vunpack.c.l.b16 %v2564
          %v2597 = vunpack.c.l.b16 %v2565
          %v2598 = vunpack.c.l.b16 %v2566
          %v2599 = vunpack.c.l.b16 %v2567
          %v2600 = vunpack.c.l.b16 %v2568
          %v2601 = vunpack.c.l.b16 %v2569
          %v2602 = vunpack.c.l.b16 %v2570
          %v2603 = vunpack.c.l.b16 %v2571
          %v2604 = vunpack.c.l.b16 %v2572
          %v2605 = vunpack.c.l.b16 %v2573
          %v2606 = vunpack.c.l.b16 %v2574
          %v2607 = vpack.c.b16 %v2592, %v2591
          %v2608 = vpack.c.b16 %v2594, %v2593
          %v2609 = vpack.c.b16 %v2596, %v2595
          %v2610 = vpack.c.b16 %v2598, %v2597
          %v2611 = vpack.c.b16 %v2600, %v2599
          %v2612 = vpack.c.b16 %v2602, %v2601
          %v2613 = vpack.c.b16 %v2604, %v2603
          %v2614 = vpack.c.b16 %v2606, %v2605
          %2623 = vmatpush.bf16.msra.mxu0 %v2614
          %2624 = vmatpush.bf16.msra.mxu0 %v2613
          %2625 = vmatpush.bf16.msra.mxu0 %v2612
          %2626 = vmatpush.bf16.msra.mxu0 %v2611
          %2627 = vmatpush.bf16.msra.mxu0 %v2610
          %2628 = vmatpush.bf16.msra.mxu0 %v2609
          %2629 = vmatpush.bf16.msra.mxu0 %v2608
          %2630 = vmatpush.bf16.msra.mxu0 %v2607
          %2631 = vmatmul.bf16.gmra.mxu0 %v2556
          %v2632 = vpop.f32.mrf.mxu0
          %v2633 = vadd.f32 0.0, %v2632
          %v2634 = vpop.f32.mrf.mxu0
          %v2635 = vadd.f32 0.0, %v2634
          %2636 = vmatmul.bf16.gmra.mxu0 %v2557
          %v2637 = vpop.f32.mrf.mxu0
          %v2638 = vadd.f32 0.0, %v2637
          %v2639 = vpop.f32.mrf.mxu0
          %v2640 = vadd.f32 0.0, %v2639
          %2641 = vmatmul.bf16.gmra.mxu0 %v2558
          %v2642 = vpop.f32.mrf.mxu0
          %v2643 = vadd.f32 0.0, %v2642
          %v2644 = vpop.f32.mrf.mxu0
          %v2645 = vadd.f32 0.0, %v2644
          %2646 = vdwg.mxu0
          %v2647 = vld [vmem:[#allocation2] sm:$0xff]
          %2648 = vadd.xlane.f32.xlu0 %v2647
          %v2649 = vpop.xlane.xlu0 %2648
          %v2650 = vrot.slane %v2649, 4
          %v2651 = vadd.f32 %v2649, %v2650
          %v2652 = vrot.slane %v2651, 2
          %v2653 = vadd.f32 %v2651, %v2652
          %v2654 = vrot.slane %v2653, 1
          %v2655 = vadd.f32 %v2653, %v2654
          %s2656 = vtos %v2655
          %s2657 = smul.f32 %s2656, 3.0517578e-05
          %v2658 = vsub.f32 %v2633, %v2638
          %v2659 = vsub.f32 %v2635, %v2640
          %v2660 = vand.u32 2147483647, %v2658
          %v2661 = vand.u32 2147483647, %v2659
          %v2662 = vadd.f32 %v2660, %v2661
          %2663 = vadd.xlane.f32.xlu0 %v2662
          %v2664 = vpop.xlane.xlu0 %2663
          %v2665 = vrot.slane %v2664, 4
          %v2666 = vadd.f32 %v2664, %v2665
          %v2667 = vrot.slane %v2666, 2
          %v2668 = vadd.f32 %v2666, %v2667
          %v2669 = vrot.slane %v2668, 1
          %v2670 = vadd.f32 %v2668, %v2669
          %s2671 = vtos %v2670
          %s2672 = smul.f32 %s2671, 0.00048828125
          %v2673 = vld [vmem:[#allocation3] sm:$0xff]
          %2674 = vadd.xlane.f32.xlu0 %v2673
          %v2675 = vpop.xlane.xlu0 %2674
          %v2676 = vrot.slane %v2675, 4
          %v2677 = vadd.f32 %v2675, %v2676
          %v2678 = vrot.slane %v2677, 2
          %v2679 = vadd.f32 %v2677, %v2678
          %v2680 = vrot.slane %v2679, 1
          %v2681 = vadd.f32 %v2679, %v2680
          %s2682 = vtos %v2681
          %s2683 = smul.f32 %s2682, 3.0517578e-05
          %v2684 = vsub.f32 %v2633, %v2643
          %v2685 = vsub.f32 %v2635, %v2645
          %v2686 = vand.u32 2147483647, %v2684
          %v2687 = vand.u32 2147483647, %v2685
          %v2688 = vadd.f32 %v2686, %v2687
          %2689 = vadd.xlane.f32.xlu0 %v2688
          %v2690 = vpop.xlane.xlu0 %2689
          %v2691 = vrot.slane %v2690, 4
          %v2692 = vadd.f32 %v2690, %v2691
          %v2693 = vrot.slane %v2692, 2
          %v2694 = vadd.f32 %v2692, %v2693
          %v2695 = vrot.slane %v2694, 1
          %v2696 = vadd.f32 %v2694, %v2695
          %s2697 = vtos %v2696
          %s2698 = smul.f32 %s2697, 0.00048828125
          %s2699 = sadd.f32 %s2683, 1e-07
          %v2700 = vstv %s2699
          %v2701 = vrcp.pop %v2700
          %v2702 = vmul.f32 %v2700, %v2701
          %v2703 = vsub.f32 1.0, %v2702
          %v2704 = vmul.f32 %v2701, %v2703
          %v2705 = vadd.f32 %v2701, %v2704
          %vm2706 = vweird.f32 %v2700
          %vm2707 = vweird.f32 %v2701
          %vm2708 = vmor %vm2706, %vm2707
          %v2709 = vsel %vm2708, %v2701, %v2705
          %v2710 = vand.u32 2147483647, %v2700
          %vm2711 = vcmp.eq.f32.partialorder %v2710, 8.507059e+37
          %v2712 = vand.u32 %v2700, 2147483648
          %v2713 = vor.u32 1.1754944e-38, %v2712
          %v2714 = vsel %vm2711, %v2713, %v2709
          %s2715 = vtos %v2714
          %s2716 = smul.f32 %s2657, %s2715
          %s2717 = sadd.f32 %s2698, 1e-07
          %v2718 = vstv %s2717
          %v2719 = vrcp.pop %v2718
          %v2720 = vmul.f32 %v2718, %v2719
          %v2721 = vsub.f32 1.0, %v2720
          %v2722 = vmul.f32 %v2719, %v2721
          %v2723 = vadd.f32 %v2719, %v2722
          %vm2724 = vweird.f32 %v2718
          %vm2725 = vweird.f32 %v2719
          %vm2726 = vmor %vm2724, %vm2725
          %v2727 = vsel %vm2726, %v2719, %v2723
          %v2728 = vand.u32 2147483647, %v2718
          %vm2729 = vcmp.eq.f32.partialorder %v2728, 8.507059e+37
          %v2730 = vand.u32 %v2718, 2147483648
          %v2731 = vor.u32 1.1754944e-38, %v2730
          %v2732 = vsel %vm2729, %v2731, %v2727
          %s2733 = vtos %v2732
          %s2734 = smul.f32 %s2672, %s2733
          %s2735 = sadd.f32 %s2716, %s2734
          %s2736 = scalar_lea.smem [#allocation5], 0
          %2737 = sst [smem:[%s2736]] %s2735
        $region40: #{ram_contrast_loss.1} parent=31 // pred_fallthru
          _
        // Predicated region
        $region41: #{ram_contrast_loss.1} parent=31 // pred_check
          %p2738 = pneg %p96
        $region42: #{ram_contrast_loss.1} parent=31 // pred_check_branch
          %2740 = sbr.rel (%p2738) target = $region44
        $region43: #{ram_contrast_loss.1} parent=31 // pred_region
          %2742 = vsyncadd [#allocation6], 0
          %s2744 = sshll.u32 %s3, 4
          %s2745 = int_to_ptr.hbm [resolvable:$true] %s2744
          %2747 = dma.smem_to_hbm [#allocation5], 16, %s2745, [#allocation6]
        $region44: #{ram_contrast_loss.1} parent=31 // pred_fallthru
          _
        // Predicated region
        $region45: #{ram_contrast_loss.1} parent=31 // pred_check
          %p2748 = pneg %p96
        $region46: #{ram_contrast_loss.1} parent=31 // pred_check_branch
          %2750 = sbr.rel (%p2748) target = $region48
        $region47: #{ram_contrast_loss.1} parent=31 // pred_region
          %2752 = dma.done [#allocation6], 16
        $region48: #{ram_contrast_loss.1} parent=31 // pred_fallthru
          _
        %2753 = sfence
      $region32: #{ram_contrast_loss.1} parent=5 // pred_fallthru
        _
      %p2754 = scmp.le.s32.totalorder 2, %s10
      // Predicated region
      $region49: #{ram_contrast_loss.1} parent=5 // pred_check
        %p2755 = pneg %p2754
      $region50: #{ram_contrast_loss.1} parent=5 // pred_check_branch
        %2757 = sbr.rel (%p2755) target = $region52
      $region51: #{ram_contrast_loss.1} parent=5 // pred_region
        %s2758 = ssub.s32 %s10, 2
      $region52: #{ram_contrast_loss.1} parent=5 // pred_fallthru
        _
    $region6: #{ram_contrast_loss.1} parent=1 // loop_footer
      %s14 = sadd.s32 1, %s10
    $region7: #{ram_contrast_loss.1} parent=1 // loop_footer_branch
      %9 = sbr.rel target = $region3
    $region8: #{ram_contrast_loss.1} parent=1 // loop_exit
      _
    %2759 = vsyncpa [#allocation6], 1
    %s2760 = scalar_lea.sflag [#allocation6], 1
    %2761 = vsyncpa %s2760, 1

</llo_original>
